<compile_context>
chip_gen: v5e
topology: v5e:2x2
jax: 0.10.0
libtpu: 0.0.40
codegen_flags: <defaults>
</compile_context>

<pallas_src>
import jax
import jax.numpy as jnp
from jax import lax
from jax.experimental import pallas as pl
from jax.experimental.pallas import tpu as pltpu

# ---- small, BERT-like config ----
B = 2                 # batch
S = 8                 # sequence length
D = 32                # hidden_size
H = 4                 # num_attention_heads
DH = D // H           # head dim
I = 64                # intermediate_size
AD = int(D * 0.25)    # adapter hidden (mlp_ratio=0.25)
N_LAYERS = 2          # config.num_hidden_layers (BertEncoder depth)
EPS = 1e-12           # layer_norm_eps
SCALE = 0.5           # BertLayer.scale
INV_SQRT_DH = 1.0 / float(DH) ** 0.5

WA_COLS = 4 * D + AD + I + AD     # 208 : [Wqkv(96) | Wo(32) | Wa1(8) | Wim(72)]
WB_ROWS = AD + I + AD             # 80  : [Wa2(8) ; Wo2(64) ; Wm2(8)]
BIAS_ROWS = 11                    # packed bias / LN vectors
BIAS_COLS = 3 * D                 # 96 (widest bias row = fused QKV bias)

# bias slab row indices
(_BQKV, _BIM, _BO, _LN1G, _LN1B, _BA1, _BA2, _BO2, _LN2G, _LN2B, _BM2) = range(11)


def _gelu(x):
    # exact (erf-based) GELU, matching torch.nn.GELU / HF "gelu"
    return 0.5 * x * (1.0 + lax.erf(x * jnp.float32(0.7071067811865476)))


def _layernorm(x, g, b):
    mu = jnp.mean(x, axis=-1, keepdims=True)
    var = jnp.mean((x - mu) ** 2, axis=-1, keepdims=True)
    return (x - mu) * lax.rsqrt(var + jnp.float32(EPS)) * g + b


def bert_encoder_kernel(
    x_ref,       # (B*S, D)                 encoder input, rows ordered b*S + s
    wa_ref,      # (1, D, WA_COLS)          this layer's D-input weight slab
    wb_ref,      # (1, WB_ROWS, D)          this layer's remaining weight slab
    bias_ref,    # (1, BIAS_ROWS, BIAS_COLS) packed bias / LayerNorm vectors
    out_ref,     # (B*S, D)
    h_ref,       # VMEM scratch (B*S, D)    activation carried across layers
):
    f32 = jnp.float32
    l = pl.program_id(0)

    @pl.when(l == 0)
    def _():
        h_ref[...] = x_ref[...]

    h = h_ref[...]                                 # (B*S, D)

    wa = wa_ref[0]                                 # (D, 208)
    wb = wb_ref[0]                                 # (80, D)
    bias = bias_ref[0]                             # (11, 96)

    # static slices of the packed weight slabs (no runtime cost)
    w_qkv = wa[:, 0:3 * D]                         # (D, 3*D)
    w_o = wa[:, 3 * D:4 * D]                       # (D, D)
    w_a1 = wa[:, 4 * D:4 * D + AD]                 # (D, AD)
    w_im = wa[:, 4 * D + AD:WA_COLS]               # (D, I+AD)

    w_a2 = wb[0:AD]                                # (AD, D)
    w_o2 = wb[AD:AD + I]                           # (I, D)
    w_m2 = wb[AD + I:WB_ROWS]                      # (AD, D)

    b_qkv = bias[_BQKV:_BQKV + 1, :3 * D]          # (1, 3*D)
    b_im = bias[_BIM:_BIM + 1, :I + AD]            # (1, I+AD)
    b_o = bias[_BO:_BO + 1, :D]
    ln1g = bias[_LN1G:_LN1G + 1, :D]
    ln1b = bias[_LN1B:_LN1B + 1, :D]
    b_a1 = bias[_BA1:_BA1 + 1, :AD]
    b_a2 = bias[_BA2:_BA2 + 1, :D]
    b_o2 = bias[_BO2:_BO2 + 1, :D]
    ln2g = bias[_LN2G:_LN2G + 1, :D]
    ln2b = bias[_LN2B:_LN2B + 1, :D]
    b_m2 = bias[_BM2:_BM2 + 1, :D]

    # --- BertSelfAttention ---
    # One full-width QKV projection (B*S, D) @ (D, 3D).
    qkv = jnp.dot(h, w_qkv, preferred_element_type=f32) + b_qkv    # (B*S, 3*D)
    qkv3 = qkv.reshape(B, S, 3 * D)

    def head_batch(off):
        # gather head slices onto one leading (H*B) batch axis; n = hh*B + b
        return jnp.concatenate(
            [qkv3[:, :, off + hh * DH: off + (hh + 1) * DH] for hh in range(H)],
            axis=0)                                                 # (H*B, S, DH)

    qn = head_batch(0)
    kn = head_batch(D)
    vn = head_batch(2 * D)

    s = jnp.einsum('nse,nte->nst', qn, kn, preferred_element_type=f32)
    s = s * jnp.float32(INV_SQRT_DH)
    s = s - jnp.max(s, axis=-1, keepdims=True)
    p = jnp.exp(s)
    p = p / jnp.sum(p, axis=-1, keepdims=True)     # exact division (f32 parity)
    ctx = jnp.einsum('nst,nte->nse', p, vn, preferred_element_type=f32)  # (H*B,S,DH)

    # Pack heads back along lanes -> (B*S, D), then one matmul against Wo.
    ctx2 = jnp.concatenate(
        [ctx[hh * B:(hh + 1) * B].reshape(B * S, DH) for hh in range(H)], axis=1)
    attn_dense = jnp.dot(ctx2, w_o, preferred_element_type=f32) + b_o   # (B*S, D)

    # --- BertSelfOutput: LayerNorm(residual with layer input) ---
    attn_out = _layernorm(attn_dense + h, ln1g, ln1b)

    # --- attn_adapter (skip_connect=True) ---
    a = _gelu(jnp.dot(attn_out, w_a1, preferred_element_type=f32) + b_a1)
    a = jnp.dot(a, w_a2, preferred_element_type=f32) + b_a2
    att = attn_out + a

    # --- feed_forward_chunk: fused [intermediate | mlp_adapter.fc1], shared GELU ---
    g = _gelu(jnp.dot(att, w_im, preferred_element_type=f32) + b_im)
    inter = g[:, :I]
    mhid = g[:, I:I + AD]

    ff = jnp.dot(inter, w_o2, preferred_element_type=f32) + b_o2
    ln_out = _layernorm(ff + att, ln2g, ln2b)          # AdapterBertOutput

    m = jnp.dot(mhid, w_m2, preferred_element_type=f32) + b_m2   # no skip

    new_h = ln_out + jnp.float32(SCALE) * m
    h_ref[...] = new_h

    @pl.when(l == N_LAYERS - 1)
    def _():
        out_ref[...] = new_h


def bert_encoder_forward(x, wa_all, wb_all, bias_all):
    """x: (B, S, D) f32; *_all: per-layer slabs stacked on a leading layer axis."""
    x2 = x.reshape(B * S, D)
    out = pl.pallas_call(
        bert_encoder_kernel,
        out_shape=jax.ShapeDtypeStruct((B * S, D), jnp.float32),
        grid=(N_LAYERS,),
        in_specs=[
            pl.BlockSpec((B * S, D), lambda l: (0, 0)),
            pl.BlockSpec((1, D, WA_COLS), lambda l: (l, 0, 0)),
            pl.BlockSpec((1, WB_ROWS, D), lambda l: (l, 0, 0)),
            pl.BlockSpec((1, BIAS_ROWS, BIAS_COLS), lambda l: (l, 0, 0)),
        ],
        out_specs=pl.BlockSpec((B * S, D), lambda l: (0, 0)),
        scratch_shapes=[pltpu.VMEM((B * S, D), jnp.float32)],
        compiler_params=pltpu.CompilerParams(
            dimension_semantics=("arbitrary",)),
    )(x2, wa_all, wb_all, bias_all)
    return out.reshape(B, S, D)


# ---------------- parameter construction & host-side packing ----------------

def init_layer_params(key):
    """Deterministic synthetic weights. Linear weights stored as (in, out)."""
    ks = jax.random.split(key, 20)
    std = 0.02

    def w(k, fin, fout):
        return jax.random.normal(k, (fin, fout), jnp.float32) * std

    def bvec(k, n):
        return jax.random.normal(k, (n,), jnp.float32) * std

    wq, bq = w(ks[0], D, D), bvec(ks[1], D)
    wk, bk = w(ks[2], D, D), bvec(ks[3], D)
    wv, bv = w(ks[4], D, D), bvec(ks[5], D)
    wo, bo = w(ks[6], D, D), bvec(ks[7], D)
    ln1g = jnp.ones((D,), jnp.float32)
    ln1b = jnp.zeros((D,), jnp.float32)
    wa1, ba1 = w(ks[8], D, AD), bvec(ks[9], AD)
    wa2, ba2 = w(ks[10], AD, D), bvec(ks[11], D)
    wi, bi = w(ks[12], D, I), bvec(ks[13], I)
    wo2, bo2 = w(ks[14], I, D), bvec(ks[15], D)
    ln2g = jnp.ones((D,), jnp.float32)
    ln2b = jnp.zeros((D,), jnp.float32)
    wm1, bm1 = w(ks[16], D, AD), bvec(ks[17], AD)
    wm2, bm2 = w(ks[18], AD, D), bvec(ks[19], D)
    return (wq, bq, wk, bk, wv, bv, wo, bo, ln1g, ln1b,
            wa1, ba1, wa2, ba2, wi, bi, wo2, bo2, ln2g, ln2b,
            wm1, bm1, wm2, bm2)


def pack_layer_params(p):
    """Host-side re-arrangement into the 3 packed kernel slabs (free)."""
    (wq, bq, wk, bk, wv, bv, wo, bo, ln1g, ln1b,
     wa1, ba1, wa2, ba2, wi, bi, wo2, bo2, ln2g, ln2b,
     wm1, bm1, wm2, bm2) = p

    w_qkv = jnp.concatenate([wq, wk, wv], axis=1)            # (D, 3*D)
    b_qkv = jnp.concatenate([bq, bk, bv])                    # (3*D,)
    w_im = jnp.concatenate([wi, wm1], axis=1)                # (D, I+AD)
    b_im = jnp.concatenate([bi, bm1])                        # (I+AD,)

    slab_a = jnp.concatenate([w_qkv, wo, wa1, w_im], axis=1)  # (D, 208)
    slab_b = jnp.concatenate([wa2, wo2, wm2], axis=0)         # (80, D)

    def pad(v):
        return jnp.pad(v, (0, BIAS_COLS - v.shape[0]))

    bias = jnp.stack([pad(b_qkv), pad(b_im), pad(bo), pad(ln1g), pad(ln1b),
                      pad(ba1), pad(ba2), pad(bo2), pad(ln2g), pad(ln2b),
                      pad(bm2)], axis=0)                      # (11, 96)
    return slab_a, slab_b, bias


if __name__ == "__main__":
    key = jax.random.PRNGKey(0)
    k_x, k_p = jax.random.split(key)
    x = jax.random.normal(k_x, (B, S, D), jnp.float32)
    layer_keys = jax.random.split(k_p, N_LAYERS)
    packed = [pack_layer_params(init_layer_params(k)) for k in layer_keys]

    wa_all = jnp.stack([pk[0] for pk in packed], axis=0)    # (L, D, 208)
    wb_all = jnp.stack([pk[1] for pk in packed], axis=0)    # (L, 80, D)
    bias_all = jnp.stack([pk[2] for pk in packed], axis=0)  # (L, 11, 96)

    out = bert_encoder_forward(x, wa_all, wb_all, bias_all)
    jax.block_until_ready(out)
    assert out.shape == (B, S, D)
    print("KERNEL_OK")
</pallas_src>

<mosaic_0001>
module attributes {stable_mosaic.version = 11 : i64} {
  func.func @bert_encoder_kernel(%arg0: i32, %arg1: memref<16x32xf32, #tpu.memory_space<vmem>>, %arg2: memref<1x32x208xf32, #tpu.memory_space<vmem>>, %arg3: memref<1x80x32xf32, #tpu.memory_space<vmem>>, %arg4: memref<1x11x96xf32, #tpu.memory_space<vmem>>, %arg5: memref<16x32xf32, #tpu.memory_space<vmem>>, %arg6: memref<16x32xf32, #tpu.memory_space<vmem>>) attributes {dimension_semantics = [#tpu.dimension_semantics<arbitrary>], iteration_bounds = array<i64: 2>, scalar_prefetch = 0 : i64, scratch_operands = 1 : i64, tpu.core_type = #tpu.core_type<tc>, window_params = [{pipeline_mode = #tpu.pipeline_mode<synchronous>, transform_indices = @transform_0, window_bounds = array<i64: 16, 32>}, {transform_indices = @transform_1, window_bounds = array<i64: 1, 32, 208>}, {transform_indices = @transform_2, window_bounds = array<i64: 1, 80, 32>}, {transform_indices = @transform_3, window_bounds = array<i64: 1, 11, 96>}, {pipeline_mode = #tpu.pipeline_mode<synchronous>, transform_indices = @transform_4, window_bounds = array<i64: 16, 32>}]} {
    %c0_i32 = arith.constant 0 : i32
    %0 = arith.cmpi eq, %arg0, %c0_i32 : i32
    %1 = arith.extui %0 : i1 to i32
    %c0_i32_0 = arith.constant 0 : i32
    %2 = arith.cmpi ne, %1, %c0_i32_0 : i32
    scf.if %2 {
      %c0_42 = arith.constant 0 : index
      %c0_43 = arith.constant 0 : index
      %159 = vector.load %arg1[%c0_42, %c0_43] : memref<16x32xf32, #tpu.memory_space<vmem>>, vector<16x32xf32>
      %c0_44 = arith.constant 0 : index
      %c0_45 = arith.constant 0 : index
      %160 = vector.load %arg6[%c0_44, %c0_45] : memref<16x32xf32, #tpu.memory_space<vmem>>, vector<16x32xf32>
      tpu.vector_store %arg6[%c0_44, %c0_45], %159 {strides = array<i32>} : memref<16x32xf32, #tpu.memory_space<vmem>>, vector<16x32xf32>,
    } else {
    }
    %c0 = arith.constant 0 : index
    %c0_1 = arith.constant 0 : index
    %3 = vector.load %arg6[%c0, %c0_1] : memref<16x32xf32, #tpu.memory_space<vmem>>, vector<16x32xf32>
    %c0_2 = arith.constant 0 : index
    %c0_3 = arith.constant 0 : index
    %c0_4 = arith.constant 0 : index
    %4 = vector.load %arg2[%c0_2, %c0_3, %c0_4] : memref<1x32x208xf32, #tpu.memory_space<vmem>>, vector<1x32x208xf32>
    %5 = vector.shape_cast %4 : vector<1x32x208xf32> to vector<32x208xf32>
    %c0_5 = arith.constant 0 : index
    %c0_6 = arith.constant 0 : index
    %c0_7 = arith.constant 0 : index
    %6 = vector.load %arg3[%c0_5, %c0_6, %c0_7] : memref<1x80x32xf32, #tpu.memory_space<vmem>>, vector<1x80x32xf32>
    %7 = vector.shape_cast %6 : vector<1x80x32xf32> to vector<80x32xf32>
    %c0_8 = arith.constant 0 : index
    %c0_9 = arith.constant 0 : index
    %c0_10 = arith.constant 0 : index
    %8 = vector.load %arg4[%c0_8, %c0_9, %c0_10] : memref<1x11x96xf32, #tpu.memory_space<vmem>>, vector<1x11x96xf32>
    %9 = vector.shape_cast %8 : vector<1x11x96xf32> to vector<11x96xf32>
    %10 = vector.extract_strided_slice %5 {offsets = [0, 0], sizes = [32, 96], strides = [1, 1]} : vector<32x208xf32> to vector<32x96xf32>
    %11 = vector.extract_strided_slice %5 {offsets = [0, 96], sizes = [32, 32], strides = [1, 1]} : vector<32x208xf32> to vector<32x32xf32>
    %12 = vector.extract_strided_slice %5 {offsets = [0, 128], sizes = [32, 8], strides = [1, 1]} : vector<32x208xf32> to vector<32x8xf32>
    %13 = vector.extract_strided_slice %5 {offsets = [0, 136], sizes = [32, 72], strides = [1, 1]} : vector<32x208xf32> to vector<32x72xf32>
    %14 = vector.extract_strided_slice %7 {offsets = [0, 0], sizes = [8, 32], strides = [1, 1]} : vector<80x32xf32> to vector<8x32xf32>
    %15 = vector.extract_strided_slice %7 {offsets = [8, 0], sizes = [64, 32], strides = [1, 1]} : vector<80x32xf32> to vector<64x32xf32>
    %16 = vector.extract_strided_slice %7 {offsets = [72, 0], sizes = [8, 32], strides = [1, 1]} : vector<80x32xf32> to vector<8x32xf32>
    %17 = vector.extract_strided_slice %9 {offsets = [0, 0], sizes = [1, 96], strides = [1, 1]} : vector<11x96xf32> to vector<1x96xf32>
    %18 = vector.extract_strided_slice %9 {offsets = [1, 0], sizes = [1, 72], strides = [1, 1]} : vector<11x96xf32> to vector<1x72xf32>
    %19 = vector.extract_strided_slice %9 {offsets = [2, 0], sizes = [1, 32], strides = [1, 1]} : vector<11x96xf32> to vector<1x32xf32>
    %20 = vector.extract_strided_slice %9 {offsets = [3, 0], sizes = [1, 32], strides = [1, 1]} : vector<11x96xf32> to vector<1x32xf32>
    %21 = vector.extract_strided_slice %9 {offsets = [4, 0], sizes = [1, 32], strides = [1, 1]} : vector<11x96xf32> to vector<1x32xf32>
    %22 = vector.extract_strided_slice %9 {offsets = [5, 0], sizes = [1, 8], strides = [1, 1]} : vector<11x96xf32> to vector<1x8xf32>
    %23 = vector.extract_strided_slice %9 {offsets = [6, 0], sizes = [1, 32], strides = [1, 1]} : vector<11x96xf32> to vector<1x32xf32>
    %24 = vector.extract_strided_slice %9 {offsets = [7, 0], sizes = [1, 32], strides = [1, 1]} : vector<11x96xf32> to vector<1x32xf32>
    %25 = vector.extract_strided_slice %9 {offsets = [8, 0], sizes = [1, 32], strides = [1, 1]} : vector<11x96xf32> to vector<1x32xf32>
    %26 = vector.extract_strided_slice %9 {offsets = [9, 0], sizes = [1, 32], strides = [1, 1]} : vector<11x96xf32> to vector<1x32xf32>
    %27 = vector.extract_strided_slice %9 {offsets = [10, 0], sizes = [1, 32], strides = [1, 1]} : vector<11x96xf32> to vector<1x32xf32>
    %cst = arith.constant dense<0.000000e+00> : vector<16x96xf32>
    %28 = tpu.matmul %3, %10, %cst {dimension_numbers = #tpu.dot_dimension_numbers<[1], [0], [0], [1], [0, 0, 1, 1], [], []>} : vector<16x32xf32>, vector<32x96xf32>, vector<16x96xf32> -> vector<16x96xf32>
    %29 = vector.broadcast %17 : vector<1x96xf32> to vector<16x96xf32>
    %30 = arith.addf %28, %29 : vector<16x96xf32>
    %31 = vector.shape_cast %30 : vector<16x96xf32> to vector<2x8x96xf32>
    %32 = vector.extract_strided_slice %31 {offsets = [0, 0, 0], sizes = [2, 8, 8], strides = [1, 1, 1]} : vector<2x8x96xf32> to vector<2x8x8xf32>
    %33 = vector.extract_strided_slice %31 {offsets = [0, 0, 8], sizes = [2, 8, 8], strides = [1, 1, 1]} : vector<2x8x96xf32> to vector<2x8x8xf32>
    %34 = vector.extract_strided_slice %31 {offsets = [0, 0, 16], sizes = [2, 8, 8], strides = [1, 1, 1]} : vector<2x8x96xf32> to vector<2x8x8xf32>
    %35 = vector.extract_strided_slice %31 {offsets = [0, 0, 24], sizes = [2, 8, 8], strides = [1, 1, 1]} : vector<2x8x96xf32> to vector<2x8x8xf32>
    %36 = tpu.concatenate %32, %33, %34, %35 in 0 : vector<2x8x8xf32>, vector<2x8x8xf32>, vector<2x8x8xf32>, vector<2x8x8xf32> -> vector<8x8x8xf32>
    %37 = vector.extract_strided_slice %31 {offsets = [0, 0, 32], sizes = [2, 8, 8], strides = [1, 1, 1]} : vector<2x8x96xf32> to vector<2x8x8xf32>
    %38 = vector.extract_strided_slice %31 {offsets = [0, 0, 40], sizes = [2, 8, 8], strides = [1, 1, 1]} : vector<2x8x96xf32> to vector<2x8x8xf32>
    %39 = vector.extract_strided_slice %31 {offsets = [0, 0, 48], sizes = [2, 8, 8], strides = [1, 1, 1]} : vector<2x8x96xf32> to vector<2x8x8xf32>
    %40 = vector.extract_strided_slice %31 {offsets = [0, 0, 56], sizes = [2, 8, 8], strides = [1, 1, 1]} : vector<2x8x96xf32> to vector<2x8x8xf32>
    %41 = tpu.concatenate %37, %38, %39, %40 in 0 : vector<2x8x8xf32>, vector<2x8x8xf32>, vector<2x8x8xf32>, vector<2x8x8xf32> -> vector<8x8x8xf32>
    %42 = vector.extract_strided_slice %31 {offsets = [0, 0, 64], sizes = [2, 8, 8], strides = [1, 1, 1]} : vector<2x8x96xf32> to vector<2x8x8xf32>
    %43 = vector.extract_strided_slice %31 {offsets = [0, 0, 72], sizes = [2, 8, 8], strides = [1, 1, 1]} : vector<2x8x96xf32> to vector<2x8x8xf32>
    %44 = vector.extract_strided_slice %31 {offsets = [0, 0, 80], sizes = [2, 8, 8], strides = [1, 1, 1]} : vector<2x8x96xf32> to vector<2x8x8xf32>
    %45 = vector.extract_strided_slice %31 {offsets = [0, 0, 88], sizes = [2, 8, 8], strides = [1, 1, 1]} : vector<2x8x96xf32> to vector<2x8x8xf32>
    %46 = tpu.concatenate %42, %43, %44, %45 in 0 : vector<2x8x8xf32>, vector<2x8x8xf32>, vector<2x8x8xf32>, vector<2x8x8xf32> -> vector<8x8x8xf32>
    "tpu.trace_start"() <{level = 10 : i32, message = "nse,nte->nst"}> : () -> ()
    %cst_11 = arith.constant dense<0.000000e+00> : vector<8x8x8xf32>
    %47 = tpu.matmul %36, %41, %cst_11 {dimension_numbers = #tpu.dot_dimension_numbers<[2], [2], [1], [1], [0, 0, 0, 1, 1, 1], [0], [0]>} : vector<8x8x8xf32>, vector<8x8x8xf32>, vector<8x8x8xf32> -> vector<8x8x8xf32>
    "tpu.trace_stop"() : () -> ()
    %cst_12 = arith.constant 0.353553385 : f32
    %48 = vector.broadcast %cst_12 : f32 to vector<8x8x8xf32>
    %49 = arith.mulf %47, %48 : vector<8x8x8xf32>
    %cst_13 = arith.constant dense<0xFF800000> : vector<8x8xf32>
    %50 = vector.multi_reduction <maximumf>, %49, %cst_13 [2] : vector<8x8x8xf32> to vector<8x8xf32>
    %51 = vector.shape_cast %50 : vector<8x8xf32> to vector<8x8x1xf32>
    %52 = vector.broadcast %51 : vector<8x8x1xf32> to vector<8x8x8xf32>
    %53 = arith.subf %49, %52 : vector<8x8x8xf32>
    %54 = math.exp %53 : vector<8x8x8xf32>
    %cst_14 = arith.constant dense<0.000000e+00> : vector<8x8xf32>
    %55 = vector.multi_reduction <add>, %54, %cst_14 [2] : vector<8x8x8xf32> to vector<8x8xf32>
    %56 = vector.shape_cast %55 : vector<8x8xf32> to vector<8x8x1xf32>
    %57 = vector.broadcast %56 : vector<8x8x1xf32> to vector<8x8x8xf32>
    %58 = arith.divf %54, %57 : vector<8x8x8xf32>
    "tpu.trace_start"() <{level = 10 : i32, message = "nst,nte->nse"}> : () -> ()
    %cst_15 = arith.constant dense<0.000000e+00> : vector<8x8x8xf32>
    %59 = tpu.matmul %58, %46, %cst_15 {dimension_numbers = #tpu.dot_dimension_numbers<[2], [1], [1], [2], [0, 0, 0, 1, 1, 2], [0], [0]>} : vector<8x8x8xf32>, vector<8x8x8xf32>, vector<8x8x8xf32> -> vector<8x8x8xf32>
    "tpu.trace_stop"() : () -> ()
    %60 = vector.extract_strided_slice %59 {offsets = [0, 0, 0], sizes = [2, 8, 8], strides = [1, 1, 1]} : vector<8x8x8xf32> to vector<2x8x8xf32>
    %61 = vector.shape_cast %60 : vector<2x8x8xf32> to vector<16x8xf32>
    %62 = vector.extract_strided_slice %59 {offsets = [2, 0, 0], sizes = [2, 8, 8], strides = [1, 1, 1]} : vector<8x8x8xf32> to vector<2x8x8xf32>
    %63 = vector.shape_cast %62 : vector<2x8x8xf32> to vector<16x8xf32>
    %64 = vector.extract_strided_slice %59 {offsets = [4, 0, 0], sizes = [2, 8, 8], strides = [1, 1, 1]} : vector<8x8x8xf32> to vector<2x8x8xf32>
    %65 = vector.shape_cast %64 : vector<2x8x8xf32> to vector<16x8xf32>
    %66 = vector.extract_strided_slice %59 {offsets = [6, 0, 0], sizes = [2, 8, 8], strides = [1, 1, 1]} : vector<8x8x8xf32> to vector<2x8x8xf32>
    %67 = vector.shape_cast %66 : vector<2x8x8xf32> to vector<16x8xf32>
    %68 = tpu.concatenate %61, %63, %65, %67 in 1 : vector<16x8xf32>, vector<16x8xf32>, vector<16x8xf32>, vector<16x8xf32> -> vector<16x32xf32>
    %cst_16 = arith.constant dense<0.000000e+00> : vector<16x32xf32>
    %69 = tpu.matmul %68, %11, %cst_16 {dimension_numbers = #tpu.dot_dimension_numbers<[1], [0], [0], [1], [0, 0, 1, 1], [], []>} : vector<16x32xf32>, vector<32x32xf32>, vector<16x32xf32> -> vector<16x32xf32>
    %70 = vector.broadcast %19 : vector<1x32xf32> to vector<16x32xf32>
    %71 = arith.addf %69, %70 : vector<16x32xf32>
    %72 = arith.addf %71, %3 : vector<16x32xf32>
    %cst_17 = arith.constant dense<0.000000e+00> : vector<16xf32>
    %73 = vector.multi_reduction <add>, %72, %cst_17 [1] : vector<16x32xf32> to vector<16xf32>
    %74 = vector.shape_cast %73 : vector<16xf32> to vector<16x1xf32>
    %cst_18 = arith.constant 3.200000e+01 : f32
    %75 = vector.broadcast %cst_18 : f32 to vector<16x1xf32>
    %76 = arith.divf %74, %75 : vector<16x1xf32>
    %77 = vector.broadcast %76 : vector<16x1xf32> to vector<16x32xf32>
    %78 = arith.subf %72, %77 : vector<16x32xf32>
    %79 = arith.mulf %78, %78 : vector<16x32xf32>
    %cst_19 = arith.constant dense<0.000000e+00> : vector<16xf32>
    %80 = vector.multi_reduction <add>, %79, %cst_19 [1] : vector<16x32xf32> to vector<16xf32>
    %81 = vector.shape_cast %80 : vector<16xf32> to vector<16x1xf32>
    %cst_20 = arith.constant 3.200000e+01 : f32
    %82 = vector.broadcast %cst_20 : f32 to vector<16x1xf32>
    %83 = arith.divf %81, %82 : vector<16x1xf32>
    %84 = vector.broadcast %76 : vector<16x1xf32> to vector<16x32xf32>
    %85 = arith.subf %72, %84 : vector<16x32xf32>
    %cst_21 = arith.constant 9.99999996E-13 : f32
    %86 = vector.broadcast %cst_21 : f32 to vector<16x1xf32>
    %87 = arith.addf %83, %86 : vector<16x1xf32>
    %88 = math.rsqrt %87 : vector<16x1xf32>
    %89 = vector.broadcast %88 : vector<16x1xf32> to vector<16x32xf32>
    %90 = arith.mulf %85, %89 : vector<16x32xf32>
    %91 = vector.broadcast %20 : vector<1x32xf32> to vector<16x32xf32>
    %92 = arith.mulf %90, %91 : vector<16x32xf32>
    %93 = vector.broadcast %21 : vector<1x32xf32> to vector<16x32xf32>
    %94 = arith.addf %92, %93 : vector<16x32xf32>
    %cst_22 = arith.constant dense<0.000000e+00> : vector<16x8xf32>
    %95 = tpu.matmul %94, %12, %cst_22 {dimension_numbers = #tpu.dot_dimension_numbers<[1], [0], [0], [1], [0, 0, 1, 1], [], []>} : vector<16x32xf32>, vector<32x8xf32>, vector<16x8xf32> -> vector<16x8xf32>
    %96 = vector.broadcast %22 : vector<1x8xf32> to vector<16x8xf32>
    %97 = arith.addf %95, %96 : vector<16x8xf32>
    %cst_23 = arith.constant 5.000000e-01 : f32
    %98 = vector.broadcast %cst_23 : f32 to vector<16x8xf32>
    %99 = arith.mulf %98, %97 : vector<16x8xf32>
    %cst_24 = arith.constant 0.707106769 : f32
    %100 = vector.broadcast %cst_24 : f32 to vector<16x8xf32>
    %101 = arith.mulf %97, %100 : vector<16x8xf32>
    %102 = math.erf %101 : vector<16x8xf32>
    %cst_25 = arith.constant 1.000000e+00 : f32
    %103 = vector.broadcast %cst_25 : f32 to vector<16x8xf32>
    %104 = arith.addf %103, %102 : vector<16x8xf32>
    %105 = arith.mulf %99, %104 : vector<16x8xf32>
    %cst_26 = arith.constant dense<0.000000e+00> : vector<16x32xf32>
    %106 = tpu.matmul %105, %14, %cst_26 {dimension_numbers = #tpu.dot_dimension_numbers<[1], [0], [0], [1], [0, 0, 1, 1], [], []>} : vector<16x8xf32>, vector<8x32xf32>, vector<16x32xf32> -> vector<16x32xf32>
    %107 = vector.broadcast %23 : vector<1x32xf32> to vector<16x32xf32>
    %108 = arith.addf %106, %107 : vector<16x32xf32>
    %109 = arith.addf %94, %108 : vector<16x32xf32>
    %cst_27 = arith.constant dense<0.000000e+00> : vector<16x72xf32>
    %110 = tpu.matmul %109, %13, %cst_27 {dimension_numbers = #tpu.dot_dimension_numbers<[1], [0], [0], [1], [0, 0, 1, 1], [], []>} : vector<16x32xf32>, vector<32x72xf32>, vector<16x72xf32> -> vector<16x72xf32>
    %111 = vector.broadcast %18 : vector<1x72xf32> to vector<16x72xf32>
    %112 = arith.addf %110, %111 : vector<16x72xf32>
    %cst_28 = arith.constant 5.000000e-01 : f32
    %113 = vector.broadcast %cst_28 : f32 to vector<16x72xf32>
    %114 = arith.mulf %113, %112 : vector<16x72xf32>
    %cst_29 = arith.constant 0.707106769 : f32
    %115 = vector.broadcast %cst_29 : f32 to vector<16x72xf32>
    %116 = arith.mulf %112, %115 : vector<16x72xf32>
    %117 = math.erf %116 : vector<16x72xf32>
    %cst_30 = arith.constant 1.000000e+00 : f32
    %118 = vector.broadcast %cst_30 : f32 to vector<16x72xf32>
    %119 = arith.addf %118, %117 : vector<16x72xf32>
    %120 = arith.mulf %114, %119 : vector<16x72xf32>
    %121 = vector.extract_strided_slice %120 {offsets = [0, 0], sizes = [16, 64], strides = [1, 1]} : vector<16x72xf32> to vector<16x64xf32>
    %122 = vector.extract_strided_slice %120 {offsets = [0, 64], sizes = [16, 8], strides = [1, 1]} : vector<16x72xf32> to vector<16x8xf32>
    %cst_31 = arith.constant dense<0.000000e+00> : vector<16x32xf32>
    %123 = tpu.matmul %121, %15, %cst_31 {dimension_numbers = #tpu.dot_dimension_numbers<[1], [0], [0], [1], [0, 0, 1, 1], [], []>} : vector<16x64xf32>, vector<64x32xf32>, vector<16x32xf32> -> vector<16x32xf32>
    %124 = vector.broadcast %24 : vector<1x32xf32> to vector<16x32xf32>
    %125 = arith.addf %123, %124 : vector<16x32xf32>
    %126 = arith.addf %125, %109 : vector<16x32xf32>
    %cst_32 = arith.constant dense<0.000000e+00> : vector<16xf32>
    %127 = vector.multi_reduction <add>, %126, %cst_32 [1] : vector<16x32xf32> to vector<16xf32>
    %128 = vector.shape_cast %127 : vector<16xf32> to vector<16x1xf32>
    %cst_33 = arith.constant 3.200000e+01 : f32
    %129 = vector.broadcast %cst_33 : f32 to vector<16x1xf32>
    %130 = arith.divf %128, %129 : vector<16x1xf32>
    %131 = vector.broadcast %130 : vector<16x1xf32> to vector<16x32xf32>
    %132 = arith.subf %126, %131 : vector<16x32xf32>
    %133 = arith.mulf %132, %132 : vector<16x32xf32>
    %cst_34 = arith.constant dense<0.000000e+00> : vector<16xf32>
    %134 = vector.multi_reduction <add>, %133, %cst_34 [1] : vector<16x32xf32> to vector<16xf32>
    %135 = vector.shape_cast %134 : vector<16xf32> to vector<16x1xf32>
    %cst_35 = arith.constant 3.200000e+01 : f32
    %136 = vector.broadcast %cst_35 : f32 to vector<16x1xf32>
    %137 = arith.divf %135, %136 : vector<16x1xf32>
    %138 = vector.broadcast %130 : vector<16x1xf32> to vector<16x32xf32>
    %139 = arith.subf %126, %138 : vector<16x32xf32>
    %cst_36 = arith.constant 9.99999996E-13 : f32
    %140 = vector.broadcast %cst_36 : f32 to vector<16x1xf32>
    %141 = arith.addf %137, %140 : vector<16x1xf32>
    %142 = math.rsqrt %141 : vector<16x1xf32>
    %143 = vector.broadcast %142 : vector<16x1xf32> to vector<16x32xf32>
    %144 = arith.mulf %139, %143 : vector<16x32xf32>
    %145 = vector.broadcast %25 : vector<1x32xf32> to vector<16x32xf32>
    %146 = arith.mulf %144, %145 : vector<16x32xf32>
    %147 = vector.broadcast %26 : vector<1x32xf32> to vector<16x32xf32>
    %148 = arith.addf %146, %147 : vector<16x32xf32>
    %cst_37 = arith.constant dense<0.000000e+00> : vector<16x32xf32>
    %149 = tpu.matmul %122, %16, %cst_37 {dimension_numbers = #tpu.dot_dimension_numbers<[1], [0], [0], [1], [0, 0, 1, 1], [], []>} : vector<16x8xf32>, vector<8x32xf32>, vector<16x32xf32> -> vector<16x32xf32>
    %150 = vector.broadcast %27 : vector<1x32xf32> to vector<16x32xf32>
    %151 = arith.addf %149, %150 : vector<16x32xf32>
    %cst_38 = arith.constant 5.000000e-01 : f32
    %152 = vector.broadcast %cst_38 : f32 to vector<16x32xf32>
    %153 = arith.mulf %152, %151 : vector<16x32xf32>
    %154 = arith.addf %148, %153 : vector<16x32xf32>
    %c0_39 = arith.constant 0 : index
    %c0_40 = arith.constant 0 : index
    %155 = vector.load %arg6[%c0_39, %c0_40] : memref<16x32xf32, #tpu.memory_space<vmem>>, vector<16x32xf32>
    tpu.vector_store %arg6[%c0_39, %c0_40], %154 {strides = array<i32>} : memref<16x32xf32, #tpu.memory_space<vmem>>, vector<16x32xf32>,
    %c1_i32 = arith.constant 1 : i32
    %156 = arith.cmpi eq, %arg0, %c1_i32 : i32
    %157 = arith.extui %156 : i1 to i32
    %c0_i32_41 = arith.constant 0 : i32
    %158 = arith.cmpi ne, %157, %c0_i32_41 : i32
    scf.if %158 {
      %c0_42 = arith.constant 0 : index
      %c0_43 = arith.constant 0 : index
      %159 = vector.load %arg5[%c0_42, %c0_43] : memref<16x32xf32, #tpu.memory_space<vmem>>, vector<16x32xf32>
      tpu.vector_store %arg5[%c0_42, %c0_43], %154 {strides = array<i32>} : memref<16x32xf32, #tpu.memory_space<vmem>>, vector<16x32xf32>,
    } else {
    }
    return
  }
  func.func @transform_0(%arg0: i32) -> (i32, i32) {
    %c0_i32 = arith.constant 0 : i32
    %c0_i32_0 = arith.constant 0 : i32
    %c0_i32_1 = arith.constant 0 : i32
    return %c0_i32, %c0_i32_0 : i32, i32
  }
  func.func @transform_1(%arg0: i32) -> (i32, i32, i32) {
    %c0_i32 = arith.constant 0 : i32
    %c0_i32_0 = arith.constant 0 : i32
    %c0_i32_1 = arith.constant 0 : i32
    return %arg0, %c0_i32, %c0_i32_0 : i32, i32, i32
  }
  func.func @transform_2(%arg0: i32) -> (i32, i32, i32) {
    %c0_i32 = arith.constant 0 : i32
    %c0_i32_0 = arith.constant 0 : i32
    %c0_i32_1 = arith.constant 0 : i32
    return %arg0, %c0_i32, %c0_i32_0 : i32, i32, i32
  }
  func.func @transform_3(%arg0: i32) -> (i32, i32, i32) {
    %c0_i32 = arith.constant 0 : i32
    %c0_i32_0 = arith.constant 0 : i32
    %c0_i32_1 = arith.constant 0 : i32
    return %arg0, %c0_i32, %c0_i32_0 : i32, i32, i32
  }
  func.func @transform_4(%arg0: i32) -> (i32, i32) {
    %c0_i32 = arith.constant 0 : i32
    %c0_i32_0 = arith.constant 0 : i32
    %c0_i32_1 = arith.constant 0 : i32
    return %c0_i32, %c0_i32_0 : i32, i32
  }
}

</mosaic_0001>

<llo_original>
// kernel: tpu_custom_call.1
$region0: #{tpu_custom_call.1}
  #allocation0 [shape = 'u32[]', space=smem, size = 0x4, offset = 0x4, fixed_abs, tag = 'smem constant byte address 0x4 - core index']
  #allocation1 [shape = 'u32[72,128]{1,0:T(1,128)}', space=vmem, size = 0x9000, scoped, tag = 'internal scratch']
  #allocation2 [shape = 'f32[16,32]{1,0:T(8,128)}', space=vmem, size = 0x2000, scoped, tag = 'scratch operand']
  %s0 = inlined_call_operand.vmem [shape: f32[16,32], index: 0, kind: input, shape index: {}]
  %s1 = inlined_call_operand.vmem [shape: f32[2,32,208], index: 1, kind: input, shape index: {}]
  %s2 = inlined_call_operand.vmem [shape: f32[2,80,32], index: 2, kind: input, shape index: {}]
  %s3 = inlined_call_operand.vmem [shape: f32[2,11,96], index: 3, kind: input, shape index: {}]
  %s4 = inlined_call_operand.hbm [shape: f32[16,32], index: 4, kind: output, shape index: {}]
  %s5 = sld [smem:[#allocation0]]
  $region57: #{tpu_custom_call.1} parent=0
    _
  %s7 = ssub.s32 1, %s5
  %s8 = scalar_select 0, %s7, %s5
  $region1: #{tpu_custom_call.1} parent=0
    #allocation3 [shape = 'u8[8192]{0}', space=vmem, size = 0x2000, scoped, tag = 'output window, operand 0, single buffered']
    #allocation4 [shape = 's32[2]{0}', space=sflag, size = 0x8, scoped, tag = 'scoped memory for tpu_custom_call.1']
    %9 = vsyncpa [#allocation4], 0
    loop: start=0, step=1, limit=4
    $region2: #{tpu_custom_call.1} parent=1 // loop_pre_header
      _
    $region3: #{tpu_custom_call.1} parent=1 // loop_header
      %s11 = sphi 0, %s15
      %p12 = scmp.ge.s32.totalorder %s11, 4
      %s19 = sphi 0, %s19
      %s21 = sphi 0, %s19
      %s22 = sphi 0, %s21
      %s36 = sphi 0, %s22
      %s42 = sphi 0, %s44
      %s45 = sphi 0, %s42
      %s46 = sphi 0, %s45
      %s62 = sphi 0, %s46
      %s68 = sphi 0, %s70
      %s71 = sphi 0, %s68
      %s72 = sphi 0, %s71
      %s88 = sphi 0, %s72
      %s94 = sphi 0, %s96
      %s97 = sphi 0, %s94
      %s98 = sphi 0, %s97
      %s114 = sphi 0, %s98
      %s118 = sphi 0, %s118
      %s120 = sphi 0, %s118
      %s121 = sphi 0, %s120
      %s135 = sphi 0, %s121
    $region4: #{tpu_custom_call.1} parent=1 // loop_header_branch
      %14 = sbr.rel (%p12) target = $region8
    $region5: #{tpu_custom_call.1} parent=1 // loop_body
      %s16 = ssub.s32 %s11, 1
      %s17 = ssub.s32 %s11, 2
      %s18 = sadd.s32 %s11, 1
      %s20 = sadd.s32 %s19, 1
      %p23 = scmp.eq.s32.totalorder %s11, 1
      %p24 = scmp.ne.s32.totalorder %s19, %s21
      %p25 = scmp.eq.s32.totalorder %s11, 0
      %p26 = por %p24, %p25
      %p27 = scmp.ne.s32.totalorder %s19, %s21
      %p28 = scmp.eq.s32.totalorder %s16, 1
      %p29 = por %p27, %p28
      %p30 = scmp.ne.s32.totalorder %s21, %s22
      %p31 = scmp.eq.s32.totalorder %s16, 0
      %p32 = por %p30, %p31
      %p33 = scmp.ne.s32.totalorder %s21, %s22
      %p34 = scmp.eq.s32.totalorder %s17, 1
      %p35 = por %p33, %p34
      %p37 = scmp.ne.s32.totalorder %s22, %s36
      %p38 = scmp.eq.s32.totalorder %s17, 0
      %p39 = por %p37, %p38
      %s40 = ssub.s32 %s11, %s18
      %p41 = scmp.eq.s32.totalorder %s40, 0
      %s43 = sadd.s32 %s42, 1
      %s44 = scalar_select %p41, %s42, %s43
      %p47 = pneg %p41
      %p48 = scmp.eq.s32.totalorder %s11, 1
      %p49 = por %p47, %p48
      %p50 = scmp.ne.s32.totalorder %s42, %s45
      %p51 = scmp.eq.s32.totalorder %s11, 0
      %p52 = por %p50, %p51
      %p53 = scmp.ne.s32.totalorder %s42, %s45
      %p54 = scmp.eq.s32.totalorder %s16, 1
      %p55 = por %p53, %p54
      %p56 = scmp.ne.s32.totalorder %s45, %s46
      %p57 = scmp.eq.s32.totalorder %s16, 0
      %p58 = por %p56, %p57
      %p59 = scmp.ne.s32.totalorder %s45, %s46
      %p60 = scmp.eq.s32.totalorder %s17, 1
      %p61 = por %p59, %p60
      %p63 = scmp.ne.s32.totalorder %s46, %s62
      %p64 = scmp.eq.s32.totalorder %s17, 0
      %p65 = por %p63, %p64
      %s66 = ssub.s32 %s11, %s18
      %p67 = scmp.eq.s32.totalorder %s66, 0
      %s69 = sadd.s32 %s68, 1
      %s70 = scalar_select %p67, %s68, %s69
      %p73 = pneg %p67
      %p74 = scmp.eq.s32.totalorder %s11, 1
      %p75 = por %p73, %p74
      %p76 = scmp.ne.s32.totalorder %s68, %s71
      %p77 = scmp.eq.s32.totalorder %s11, 0
      %p78 = por %p76, %p77
      %p79 = scmp.ne.s32.totalorder %s68, %s71
      %p80 = scmp.eq.s32.totalorder %s16, 1
      %p81 = por %p79, %p80
      %p82 = scmp.ne.s32.totalorder %s71, %s72
      %p83 = scmp.eq.s32.totalorder %s16, 0
      %p84 = por %p82, %p83
      %p85 = scmp.ne.s32.totalorder %s71, %s72
      %p86 = scmp.eq.s32.totalorder %s17, 1
      %p87 = por %p85, %p86
      %p89 = scmp.ne.s32.totalorder %s72, %s88
      %p90 = scmp.eq.s32.totalorder %s17, 0
      %p91 = por %p89, %p90
      %s92 = ssub.s32 %s11, %s18
      %p93 = scmp.eq.s32.totalorder %s92, 0
      %s95 = sadd.s32 %s94, 1
      %s96 = scalar_select %p93, %s94, %s95
      %p99 = pneg %p93
      %p100 = scmp.eq.s32.totalorder %s11, 1
      %p101 = por %p99, %p100
      %p102 = scmp.ne.s32.totalorder %s94, %s97
      %p103 = scmp.eq.s32.totalorder %s11, 0
      %p104 = por %p102, %p103
      %p105 = scmp.ne.s32.totalorder %s94, %s97
      %p106 = scmp.eq.s32.totalorder %s16, 1
      %p107 = por %p105, %p106
      %p108 = scmp.ne.s32.totalorder %s97, %s98
      %p109 = scmp.eq.s32.totalorder %s16, 0
      %p110 = por %p108, %p109
      %p111 = scmp.ne.s32.totalorder %s97, %s98
      %p112 = scmp.eq.s32.totalorder %s17, 1
      %p113 = por %p111, %p112
      %p115 = scmp.ne.s32.totalorder %s98, %s114
      %p116 = scmp.eq.s32.totalorder %s17, 0
      %p117 = por %p115, %p116
      %s119 = sadd.s32 %s118, 1
      %p122 = scmp.eq.s32.totalorder %s11, 1
      %p123 = scmp.ne.s32.totalorder %s118, %s120
      %p124 = scmp.eq.s32.totalorder %s11, 0
      %p125 = por %p123, %p124
      %p126 = scmp.ne.s32.totalorder %s118, %s120
      %p127 = scmp.eq.s32.totalorder %s16, 1
      %p128 = por %p126, %p127
      %p129 = scmp.ne.s32.totalorder %s120, %s121
      %p130 = scmp.eq.s32.totalorder %s16, 0
      %p131 = por %p129, %p130
      %p132 = scmp.ne.s32.totalorder %s120, %s121
      %p133 = scmp.eq.s32.totalorder %s17, 1
      %p134 = por %p132, %p133
      %p136 = scmp.ne.s32.totalorder %s121, %s135
      %p137 = scmp.eq.s32.totalorder %s17, 0
      %p138 = por %p136, %p137
      %p139 = scmp.le.s32.totalorder 1, %s11
      %p140 = scmp.lt.s32.totalorder %s11, 3
      %p141 = pnand %p139, %p140
      %p142 = pneg %p141
      // Predicated region
      $region9: #{tpu_custom_call.1} parent=5 // pred_check
        _
      $region10: #{tpu_custom_call.1} parent=5 // pred_check_branch
        %144 = sbr.rel (%p141) target = $region12
      $region11: #{tpu_custom_call.1} parent=5 // pred_region
        %s145 = ssub.s32 %s11, 1
        // Predicated region
        $region13: #{tpu_custom_call.1} parent=11 // pred_check
          %p146 = pneg %p32
        $region14: #{tpu_custom_call.1} parent=11 // pred_check_branch
          %148 = sbr.rel (%p146) target = $region16
        $region15: #{tpu_custom_call.1} parent=11 // pred_region
          _
        $region16: #{tpu_custom_call.1} parent=11 // pred_fallthru
          _
      $region12: #{tpu_custom_call.1} parent=5 // pred_fallthru
        _
      %p149 = scmp.lt.s32.totalorder %s11, 2
      // Predicated region
      $region17: #{tpu_custom_call.1} parent=5 // pred_check
        %p150 = pneg %p149
      $region18: #{tpu_custom_call.1} parent=5 // pred_check_branch
        %152 = sbr.rel (%p150) target = $region20
      $region19: #{tpu_custom_call.1} parent=5 // pred_region
        // Predicated region
        $region21: #{tpu_custom_call.1} parent=19 // pred_check
          %p153 = pneg %p52
        $region22: #{tpu_custom_call.1} parent=19 // pred_check_branch
          %155 = sbr.rel (%p153) target = $region24
        $region23: #{tpu_custom_call.1} parent=19 // pred_region
          %p156 = scmp.lt.s32.totalorder %s11, 1
          %s157 = scalar_select %p156, %s11, 1
          %s158 = smul.addr %s157, 8
          %s159 = smul.addr %s158, 8
          %s160 = scalar_lea.vmem %s1, %s159
        $region24: #{tpu_custom_call.1} parent=19 // pred_fallthru
          _
        // Predicated region
        $region25: #{tpu_custom_call.1} parent=19 // pred_check
          %p161 = pneg %p78
        $region26: #{tpu_custom_call.1} parent=19 // pred_check_branch
          %163 = sbr.rel (%p161) target = $region28
        $region27: #{tpu_custom_call.1} parent=19 // pred_region
          %p164 = scmp.lt.s32.totalorder %s11, 1
          %s165 = scalar_select %p164, %s11, 1
          %s166 = smul.addr %s165, 10
          %s167 = smul.addr %s166, 8
          %s168 = scalar_lea.vmem %s2, %s167
        $region28: #{tpu_custom_call.1} parent=19 // pred_fallthru
          _
        // Predicated region
        $region29: #{tpu_custom_call.1} parent=19 // pred_check
          %p169 = pneg %p104
        $region30: #{tpu_custom_call.1} parent=19 // pred_check_branch
          %171 = sbr.rel (%p169) target = $region32
        $region31: #{tpu_custom_call.1} parent=19 // pred_region
          %p172 = scmp.lt.s32.totalorder %s11, 1
          %s173 = scalar_select %p172, %s11, 1
          %s174 = smul.addr %s173, 2
          %s175 = smul.addr %s174, 8
          %s176 = scalar_lea.vmem %s3, %s175
        $region32: #{tpu_custom_call.1} parent=19 // pred_fallthru
          _
      $region20: #{tpu_custom_call.1} parent=5 // pred_fallthru
        _
      %p177 = scmp.le.s32.totalorder 1, %s11
      %p178 = scmp.lt.s32.totalorder %s11, 3
      %p179 = pnand %p177, %p178
      %p180 = pneg %p179
      // Predicated region
      $region33: #{tpu_custom_call.1} parent=5 // pred_check
        _
      $region34: #{tpu_custom_call.1} parent=5 // pred_check_branch
        %182 = sbr.rel (%p179) target = $region36
      $region35: #{tpu_custom_call.1} parent=5 // pred_region
        %s183 = ssub.s32 %s11, 1
        %p184 = pneg %p32
        %p185 = pneg %p29
        %p186 = scmp.lt.s32.totalorder %s16, 1
        %s187 = scalar_select %p186, %s16, 1
        %s188 = smul.addr %s187, 8
        %s189 = smul.addr %s188, 8
        %s190 = scalar_lea.vmem %s1, %s189
        %p191 = pneg %p58
        %p192 = pneg %p55
        %p193 = scmp.lt.s32.totalorder %s16, 1
        %s194 = scalar_select %p193, %s16, 1
        %s195 = smul.addr %s194, 10
        %s196 = smul.addr %s195, 8
        %s197 = scalar_lea.vmem %s2, %s196
        %p198 = pneg %p84
        %p199 = pneg %p81
        %p200 = scmp.lt.s32.totalorder %s16, 1
        %s201 = scalar_select %p200, %s16, 1
        %s202 = smul.addr %s201, 2
        %s203 = smul.addr %s202, 8
        %s204 = scalar_lea.vmem %s3, %s203
        %p205 = pneg %p110
        %p206 = pneg %p107
        %p207 = pneg %p131
        %p208 = pneg %p128
        %p209 = scmp.lt.s32.totalorder %s16, 1
        %s210 = scalar_select %p209, %s16, 1
        %s211 = smul.addr %s210, 8
        %s212 = smul.addr %s211, 8
        %s213 = scalar_lea.vmem %s1, %s212
        %p214 = scmp.lt.s32.totalorder %s16, 1
        %s215 = scalar_select %p214, %s16, 1
        %s216 = smul.addr %s215, 10
        %s217 = smul.addr %s216, 8
        %s218 = scalar_lea.vmem %s2, %s217
        %p219 = scmp.lt.s32.totalorder %s16, 1
        %s220 = scalar_select %p219, %s16, 1
        %s221 = smul.addr %s220, 2
        %s222 = smul.addr %s221, 8
        %s223 = scalar_lea.vmem %s3, %s222
        %p224 = scmp.eq.s32.totalorder %s16, 0
        // Predicated region
        $region37: #{tpu_custom_call.1} parent=35 // pred_check
          %p225 = pneg %p224
        $region38: #{tpu_custom_call.1} parent=35 // pred_check_branch
          %227 = sbr.rel (%p225) target = $region40
        $region39: #{tpu_custom_call.1} parent=35 // pred_region
          %v228 = vld [vmem:[%s0] sm:$0xff]
          %v229 = vld [vmem:[%s0 + $0x8] sm:$0xff]
          %vm230 = vcmask 261120
          %231 = vst.msk [vmem:[#allocation2] sm:$0xff] %vm230, %v228
          %232 = vst.msk [vmem:[#allocation2 + $0x8] sm:$0xff] %vm230, %v229
        $region40: #{tpu_custom_call.1} parent=35 // pred_fallthru
          _
        %v233 = vld [vmem:[#allocation2] sm:$0xff]
        %v234 = vld [vmem:[#allocation2 + $0x8] sm:$0xff]
        %v235 = vld [vmem:[%s213] sm:$0xff]
        %v236 = vld [vmem:[%s213 + $0x8] sm:$0xff]
        %v237 = vld [vmem:[%s213 + $0x10] sm:$0xff]
        %v238 = vld [vmem:[%s213 + $0x18] sm:$0xff]
        %v239 = vld [vmem:[%s213 + $0x20] sm:$0xff]
        %v240 = vld [vmem:[%s213 + $0x28] sm:$0xff]
        %v241 = vld [vmem:[%s213 + $0x30] sm:$0xff]
        %v242 = vld [vmem:[%s213 + $0x38] sm:$0xff]
        %v243 = vld [vmem:[%s218] sm:$0xff]
        %v244 = vld [vmem:[%s218 + $0x8] sm:$0xff]
        %v245 = vld [vmem:[%s218 + $0x10] sm:$0xff]
        %v246 = vld [vmem:[%s218 + $0x18] sm:$0xff]
        %v247 = vld [vmem:[%s218 + $0x20] sm:$0xff]
        %v248 = vld [vmem:[%s218 + $0x28] sm:$0xff]
        %v249 = vld [vmem:[%s218 + $0x30] sm:$0xff]
        %v250 = vld [vmem:[%s218 + $0x38] sm:$0xff]
        %v251 = vld [vmem:[%s218 + $0x40] sm:$0xff]
        %v252 = vld [vmem:[%s218 + $0x48] sm:$0xff]
        %v253 = vld [vmem:[%s223] sm:$0xff]
        %v254 = vld [vmem:[%s223 + $0x8] sm:$0x7]
        %v255 = vperm.slane %v253, 0
        %vm256 = vcmask 261120
        %v258 = vsel %vm256, %v233, 0
        %v261 = vsel %vm256, %v234, 0
        %263 = vmatpush.msra.mxu0 0.0
        %264 = vmatpush.msra.mxu0 0.0
        %265 = vmatpush.msra.mxu0 0.0
        %266 = vmatpush.msra.mxu0 0.0
        %267 = vmatpush.msra.mxu0 0.0
        %268 = vmatpush.msra.mxu0 0.0
        %269 = vmatpush.msra.mxu0 0.0
        %270 = vmatpush.msra.mxu0 0.0
        %271 = vmatpush.msra.mxu0 0.0
        %272 = vmatpush.msra.mxu0 0.0
        %273 = vmatpush.msra.mxu0 0.0
        %274 = vmatpush.msra.mxu0 0.0
        %275 = vmatpush.msra.mxu0 %v241
        %276 = vmatpush.msra.mxu0 %v239
        %277 = vmatpush.msra.mxu0 %v237
        %278 = vmatpush.msra.mxu0 %v235
        %279 = vmatmul.f32.gmra.mxu0 %v258
        %v280 = vpop.f32.mrf.mxu0
        %v281 = vadd.f32 %v255, %v280
        %282 = vmatmul.f32.gmra.mxu0 %v261
        %v283 = vpop.f32.mrf.mxu0
        %v284 = vadd.f32 %v255, %v283
        %285 = vdwg.mxu0
        %288 = vrot.lane.b32.xlu0 %v281, 120
        %v289 = vpop.permute.xlu0 %288
        %290 = vrot.lane.b32.xlu0 %v284, 120
        %v291 = vpop.permute.xlu0 %290
        %292 = vrot.lane.b32.xlu0 %v281, 112
        %v293 = vpop.permute.xlu0 %292
        %294 = vrot.lane.b32.xlu0 %v284, 112
        %v295 = vpop.permute.xlu0 %294
        %296 = vrot.lane.b32.xlu0 %v281, 104
        %v297 = vpop.permute.xlu0 %296
        %298 = vrot.lane.b32.xlu0 %v284, 104
        %v299 = vpop.permute.xlu0 %298
        %300 = vrot.lane.b32.xlu0 %v281, 96
        %v301 = vpop.permute.xlu0 %300
        %vm302 = vcmask 64512
        %v303 = vsel %vm302, %v281, 0
        %v305 = vsel %vm302, %v301, 0
        %307 = vmatpush.xpose.msra.mxu0 0.0
        %308 = vmatpush.xpose.msra.mxu0 0.0
        %309 = vmatpush.xpose.msra.mxu0 0.0
        %310 = vmatpush.xpose.msra.mxu0 0.0
        %311 = vmatpush.xpose.msra.mxu0 0.0
        %312 = vmatpush.xpose.msra.mxu0 0.0
        %313 = vmatpush.xpose.msra.mxu0 0.0
        %314 = vmatpush.xpose.msra.mxu0 0.0
        %315 = vmatpush.xpose.msra.mxu0 0.0
        %316 = vmatpush.xpose.msra.mxu0 0.0
        %317 = vmatpush.xpose.msra.mxu0 0.0
        %318 = vmatpush.xpose.msra.mxu0 0.0
        %319 = vmatpush.xpose.msra.mxu0 0.0
        %320 = vmatpush.xpose.msra.mxu0 0.0
        %321 = vmatpush.xpose.msra.mxu0 0.0
        %322 = vmatpush.xpose.msra.mxu0 %v305
        %323 = vmatmul.f32.gmra.mxu0 %v303
        %v324 = vpop.f32.mrf.mxu0
        %v325 = vadd.f32 0.0, %v324
        %326 = vdwg.mxu0
        %327 = vrot.lane.b32.xlu0 %v284, 96
        %v328 = vpop.permute.xlu0 %327
        %v329 = vsel %vm302, %v284, 0
        %v331 = vsel %vm302, %v328, 0
        %333 = vmatpush.xpose.msra.mxu0 0.0
        %334 = vmatpush.xpose.msra.mxu0 0.0
        %335 = vmatpush.xpose.msra.mxu0 0.0
        %336 = vmatpush.xpose.msra.mxu0 0.0
        %337 = vmatpush.xpose.msra.mxu0 0.0
        %338 = vmatpush.xpose.msra.mxu0 0.0
        %339 = vmatpush.xpose.msra.mxu0 0.0
        %340 = vmatpush.xpose.msra.mxu0 0.0
        %341 = vmatpush.xpose.msra.mxu0 0.0
        %342 = vmatpush.xpose.msra.mxu0 0.0
        %343 = vmatpush.xpose.msra.mxu0 0.0
        %344 = vmatpush.xpose.msra.mxu0 0.0
        %345 = vmatpush.xpose.msra.mxu0 0.0
        %346 = vmatpush.xpose.msra.mxu0 0.0
        %347 = vmatpush.xpose.msra.mxu0 0.0
        %348 = vmatpush.xpose.msra.mxu0 %v331
        %349 = vmatmul.f32.gmra.mxu0 %v329
        %v350 = vpop.f32.mrf.mxu0
        %v351 = vadd.f32 0.0, %v350
        %352 = vdwg.mxu0
        %353 = vrot.lane.b32.xlu0 %v289, 96
        %v354 = vpop.permute.xlu0 %353
        %v355 = vsel %vm302, %v289, 0
        %v357 = vsel %vm302, %v354, 0
        %359 = vmatpush.xpose.msra.mxu0 0.0
        %360 = vmatpush.xpose.msra.mxu0 0.0
        %361 = vmatpush.xpose.msra.mxu0 0.0
        %362 = vmatpush.xpose.msra.mxu0 0.0
        %363 = vmatpush.xpose.msra.mxu0 0.0
        %364 = vmatpush.xpose.msra.mxu0 0.0
        %365 = vmatpush.xpose.msra.mxu0 0.0
        %366 = vmatpush.xpose.msra.mxu0 0.0
        %367 = vmatpush.xpose.msra.mxu0 0.0
        %368 = vmatpush.xpose.msra.mxu0 0.0
        %369 = vmatpush.xpose.msra.mxu0 0.0
        %370 = vmatpush.xpose.msra.mxu0 0.0
        %371 = vmatpush.xpose.msra.mxu0 0.0
        %372 = vmatpush.xpose.msra.mxu0 0.0
        %373 = vmatpush.xpose.msra.mxu0 0.0
        %374 = vmatpush.xpose.msra.mxu0 %v357
        %375 = vmatmul.f32.gmra.mxu0 %v355
        %v376 = vpop.f32.mrf.mxu0
        %v377 = vadd.f32 0.0, %v376
        %378 = vdwg.mxu0
        %379 = vrot.lane.b32.xlu0 %v291, 96
        %v380 = vpop.permute.xlu0 %379
        %v381 = vsel %vm302, %v291, 0
        %v383 = vsel %vm302, %v380, 0
        %385 = vmatpush.xpose.msra.mxu0 0.0
        %386 = vmatpush.xpose.msra.mxu0 0.0
        %387 = vmatpush.xpose.msra.mxu0 0.0
        %388 = vmatpush.xpose.msra.mxu0 0.0
        %389 = vmatpush.xpose.msra.mxu0 0.0
        %390 = vmatpush.xpose.msra.mxu0 0.0
        %391 = vmatpush.xpose.msra.mxu0 0.0
        %392 = vmatpush.xpose.msra.mxu0 0.0
        %393 = vmatpush.xpose.msra.mxu0 0.0
        %394 = vmatpush.xpose.msra.mxu0 0.0
        %395 = vmatpush.xpose.msra.mxu0 0.0
        %396 = vmatpush.xpose.msra.mxu0 0.0
        %397 = vmatpush.xpose.msra.mxu0 0.0
        %398 = vmatpush.xpose.msra.mxu0 0.0
        %399 = vmatpush.xpose.msra.mxu0 0.0
        %400 = vmatpush.xpose.msra.mxu0 %v383
        %401 = vmatmul.f32.gmra.mxu0 %v381
        %v402 = vpop.f32.mrf.mxu0
        %v403 = vadd.f32 0.0, %v402
        %404 = vdwg.mxu0
        %405 = vrot.lane.b32.xlu0 %v293, 96
        %v406 = vpop.permute.xlu0 %405
        %v407 = vsel %vm302, %v293, 0
        %v409 = vsel %vm302, %v406, 0
        %411 = vmatpush.xpose.msra.mxu0 0.0
        %412 = vmatpush.xpose.msra.mxu0 0.0
        %413 = vmatpush.xpose.msra.mxu0 0.0
        %414 = vmatpush.xpose.msra.mxu0 0.0
        %415 = vmatpush.xpose.msra.mxu0 0.0
        %416 = vmatpush.xpose.msra.mxu0 0.0
        %417 = vmatpush.xpose.msra.mxu0 0.0
        %418 = vmatpush.xpose.msra.mxu0 0.0
        %419 = vmatpush.xpose.msra.mxu0 0.0
        %420 = vmatpush.xpose.msra.mxu0 0.0
        %421 = vmatpush.xpose.msra.mxu0 0.0
        %422 = vmatpush.xpose.msra.mxu0 0.0
        %423 = vmatpush.xpose.msra.mxu0 0.0
        %424 = vmatpush.xpose.msra.mxu0 0.0
        %425 = vmatpush.xpose.msra.mxu0 0.0
        %426 = vmatpush.xpose.msra.mxu0 %v409
        %427 = vmatmul.f32.gmra.mxu0 %v407
        %v428 = vpop.f32.mrf.mxu0
        %v429 = vadd.f32 0.0, %v428
        %430 = vdwg.mxu0
        %431 = vrot.lane.b32.xlu0 %v295, 96
        %v432 = vpop.permute.xlu0 %431
        %v433 = vsel %vm302, %v295, 0
        %v435 = vsel %vm302, %v432, 0
        %437 = vmatpush.xpose.msra.mxu0 0.0
        %438 = vmatpush.xpose.msra.mxu0 0.0
        %439 = vmatpush.xpose.msra.mxu0 0.0
        %440 = vmatpush.xpose.msra.mxu0 0.0
        %441 = vmatpush.xpose.msra.mxu0 0.0
        %442 = vmatpush.xpose.msra.mxu0 0.0
        %443 = vmatpush.xpose.msra.mxu0 0.0
        %444 = vmatpush.xpose.msra.mxu0 0.0
        %445 = vmatpush.xpose.msra.mxu0 0.0
        %446 = vmatpush.xpose.msra.mxu0 0.0
        %447 = vmatpush.xpose.msra.mxu0 0.0
        %448 = vmatpush.xpose.msra.mxu0 0.0
        %449 = vmatpush.xpose.msra.mxu0 0.0
        %450 = vmatpush.xpose.msra.mxu0 0.0
        %451 = vmatpush.xpose.msra.mxu0 0.0
        %452 = vmatpush.xpose.msra.mxu0 %v435
        %453 = vmatmul.f32.gmra.mxu0 %v433
        %v454 = vpop.f32.mrf.mxu0
        %v455 = vadd.f32 0.0, %v454
        %456 = vdwg.mxu0
        %457 = vrot.lane.b32.xlu0 %v297, 96
        %v458 = vpop.permute.xlu0 %457
        %v459 = vsel %vm302, %v297, 0
        %v461 = vsel %vm302, %v458, 0
        %463 = vmatpush.xpose.msra.mxu0 0.0
        %464 = vmatpush.xpose.msra.mxu0 0.0
        %465 = vmatpush.xpose.msra.mxu0 0.0
        %466 = vmatpush.xpose.msra.mxu0 0.0
        %467 = vmatpush.xpose.msra.mxu0 0.0
        %468 = vmatpush.xpose.msra.mxu0 0.0
        %469 = vmatpush.xpose.msra.mxu0 0.0
        %470 = vmatpush.xpose.msra.mxu0 0.0
        %471 = vmatpush.xpose.msra.mxu0 0.0
        %472 = vmatpush.xpose.msra.mxu0 0.0
        %473 = vmatpush.xpose.msra.mxu0 0.0
        %474 = vmatpush.xpose.msra.mxu0 0.0
        %475 = vmatpush.xpose.msra.mxu0 0.0
        %476 = vmatpush.xpose.msra.mxu0 0.0
        %477 = vmatpush.xpose.msra.mxu0 0.0
        %478 = vmatpush.xpose.msra.mxu0 %v461
        %479 = vmatmul.f32.gmra.mxu0 %v459
        %v480 = vpop.f32.mrf.mxu0
        %v481 = vadd.f32 0.0, %v480
        %482 = vdwg.mxu0
        %483 = vrot.lane.b32.xlu0 %v299, 96
        %v484 = vpop.permute.xlu0 %483
        %v485 = vsel %vm302, %v299, 0
        %v487 = vsel %vm302, %v484, 0
        %489 = vmatpush.xpose.msra.mxu0 0.0
        %490 = vmatpush.xpose.msra.mxu0 0.0
        %491 = vmatpush.xpose.msra.mxu0 0.0
        %492 = vmatpush.xpose.msra.mxu0 0.0
        %493 = vmatpush.xpose.msra.mxu0 0.0
        %494 = vmatpush.xpose.msra.mxu0 0.0
        %495 = vmatpush.xpose.msra.mxu0 0.0
        %496 = vmatpush.xpose.msra.mxu0 0.0
        %497 = vmatpush.xpose.msra.mxu0 0.0
        %498 = vmatpush.xpose.msra.mxu0 0.0
        %499 = vmatpush.xpose.msra.mxu0 0.0
        %500 = vmatpush.xpose.msra.mxu0 0.0
        %501 = vmatpush.xpose.msra.mxu0 0.0
        %502 = vmatpush.xpose.msra.mxu0 0.0
        %503 = vmatpush.xpose.msra.mxu0 0.0
        %504 = vmatpush.xpose.msra.mxu0 %v487
        %505 = vmatmul.f32.gmra.mxu0 %v485
        %v506 = vpop.f32.mrf.mxu0
        %v507 = vadd.f32 0.0, %v506
        %508 = vdwg.mxu0
        %v509 = vmul.f32 %v325, 0.35355338
        %v510 = vmul.f32 %v351, 0.35355338
        %v511 = vmul.f32 %v377, 0.35355338
        %v512 = vmul.f32 %v403, 0.35355338
        %v513 = vmul.f32 %v429, 0.35355338
        %v514 = vmul.f32 %v455, 0.35355338
        %v515 = vmul.f32 %v481, 0.35355338
        %v516 = vmul.f32 %v507, 0.35355338
        %v517 = vsel %vm302, %v509, -inf
        %518 = vmax.xlane.f32.xlu0 %v517
        %v519 = vpop.xlane.xlu0 %518
        %v520 = vsel %vm302, %v510, -inf
        %521 = vmax.xlane.f32.xlu0 %v520
        %v522 = vpop.xlane.xlu0 %521
        %v523 = vsel %vm302, %v511, -inf
        %524 = vmax.xlane.f32.xlu0 %v523
        %v525 = vpop.xlane.xlu0 %524
        %v526 = vsel %vm302, %v512, -inf
        %527 = vmax.xlane.f32.xlu0 %v526
        %v528 = vpop.xlane.xlu0 %527
        %v529 = vsel %vm302, %v513, -inf
        %530 = vmax.xlane.f32.xlu0 %v529
        %v531 = vpop.xlane.xlu0 %530
        %v532 = vsel %vm302, %v514, -inf
        %533 = vmax.xlane.f32.xlu0 %v532
        %v534 = vpop.xlane.xlu0 %533
        %v535 = vsel %vm302, %v515, -inf
        %536 = vmax.xlane.f32.xlu0 %v535
        %v537 = vpop.xlane.xlu0 %536
        %v538 = vsel %vm302, %v516, -inf
        %539 = vmax.xlane.f32.xlu0 %v538
        %v540 = vpop.xlane.xlu0 %539
        %v541 = vsub.f32 %v509, %v519
        %v542 = vsub.f32 %v510, %v522
        %v543 = vsub.f32 %v511, %v525
        %v544 = vsub.f32 %v512, %v528
        %v545 = vsub.f32 %v513, %v531
        %v546 = vsub.f32 %v514, %v534
        %v547 = vsub.f32 %v515, %v537
        %v548 = vsub.f32 %v516, %v540
        %v549 = vmul.f32 %v541, 1.442695
        %v550 = vpow.pop %v549
        %v551 = vmul.f32 %v542, 1.442695
        %v552 = vpow.pop %v551
        %v553 = vmul.f32 %v543, 1.442695
        %v554 = vpow.pop %v553
        %v555 = vmul.f32 %v544, 1.442695
        %v556 = vpow.pop %v555
        %v557 = vmul.f32 %v545, 1.442695
        %v558 = vpow.pop %v557
        %v559 = vmul.f32 %v546, 1.442695
        %v560 = vpow.pop %v559
        %v561 = vmul.f32 %v547, 1.442695
        %v562 = vpow.pop %v561
        %v563 = vmul.f32 %v548, 1.442695
        %v564 = vpow.pop %v563
        %v565 = vsel %vm302, %v550, 0.0
        %566 = vadd.xlane.f32.xlu0 %v565
        %v567 = vpop.xlane.xlu0 %566
        %v568 = vsel %vm302, %v552, 0.0
        %569 = vadd.xlane.f32.xlu0 %v568
        %v570 = vpop.xlane.xlu0 %569
        %v571 = vsel %vm302, %v554, 0.0
        %572 = vadd.xlane.f32.xlu0 %v571
        %v573 = vpop.xlane.xlu0 %572
        %v574 = vsel %vm302, %v556, 0.0
        %575 = vadd.xlane.f32.xlu0 %v574
        %v576 = vpop.xlane.xlu0 %575
        %v577 = vsel %vm302, %v558, 0.0
        %578 = vadd.xlane.f32.xlu0 %v577
        %v579 = vpop.xlane.xlu0 %578
        %v580 = vsel %vm302, %v560, 0.0
        %581 = vadd.xlane.f32.xlu0 %v580
        %v582 = vpop.xlane.xlu0 %581
        %v583 = vsel %vm302, %v562, 0.0
        %584 = vadd.xlane.f32.xlu0 %v583
        %v585 = vpop.xlane.xlu0 %584
        %v586 = vsel %vm302, %v564, 0.0
        %587 = vadd.xlane.f32.xlu0 %v586
        %v588 = vpop.xlane.xlu0 %587
        %v589 = vrcp.pop %v567
        %v590 = vmul.f32 %v567, %v589
        %v591 = vsub.f32 1.0, %v590
        %v592 = vmul.f32 %v589, %v591
        %v593 = vadd.f32 %v589, %v592
        %vm594 = vweird.f32 %v567
        %vm595 = vweird.f32 %v589
        %vm596 = vmor %vm594, %vm595
        %v597 = vsel %vm596, %v589, %v593
        %v598 = vand.u32 2147483647, %v567
        %vm599 = vcmp.eq.f32.partialorder %v598, 8.507059e+37
        %v600 = vand.u32 %v567, 2147483648
        %v601 = vor.u32 1.1754944e-38, %v600
        %v602 = vsel %vm599, %v601, %v597
        %v603 = vmul.f32 %v550, %v602
        %v604 = vrcp.pop %v570
        %v605 = vmul.f32 %v570, %v604
        %v606 = vsub.f32 1.0, %v605
        %v607 = vmul.f32 %v604, %v606
        %v608 = vadd.f32 %v604, %v607
        %vm609 = vweird.f32 %v570
        %vm610 = vweird.f32 %v604
        %vm611 = vmor %vm609, %vm610
        %v612 = vsel %vm611, %v604, %v608
        %v613 = vand.u32 2147483647, %v570
        %vm614 = vcmp.eq.f32.partialorder %v613, 8.507059e+37
        %v615 = vand.u32 %v570, 2147483648
        %v616 = vor.u32 1.1754944e-38, %v615
        %v617 = vsel %vm614, %v616, %v612
        %v618 = vmul.f32 %v552, %v617
        %v619 = vrcp.pop %v573
        %v620 = vmul.f32 %v573, %v619
        %v621 = vsub.f32 1.0, %v620
        %v622 = vmul.f32 %v619, %v621
        %v623 = vadd.f32 %v619, %v622
        %vm624 = vweird.f32 %v573
        %vm625 = vweird.f32 %v619
        %vm626 = vmor %vm624, %vm625
        %v627 = vsel %vm626, %v619, %v623
        %v628 = vand.u32 2147483647, %v573
        %vm629 = vcmp.eq.f32.partialorder %v628, 8.507059e+37
        %v630 = vand.u32 %v573, 2147483648
        %v631 = vor.u32 1.1754944e-38, %v630
        %v632 = vsel %vm629, %v631, %v627
        %v633 = vmul.f32 %v554, %v632
        %v634 = vrcp.pop %v576
        %v635 = vmul.f32 %v576, %v634
        %v636 = vsub.f32 1.0, %v635
        %v637 = vmul.f32 %v634, %v636
        %v638 = vadd.f32 %v634, %v637
        %vm639 = vweird.f32 %v576
        %vm640 = vweird.f32 %v634
        %vm641 = vmor %vm639, %vm640
        %v642 = vsel %vm641, %v634, %v638
        %v643 = vand.u32 2147483647, %v576
        %vm644 = vcmp.eq.f32.partialorder %v643, 8.507059e+37
        %v645 = vand.u32 %v576, 2147483648
        %v646 = vor.u32 1.1754944e-38, %v645
        %v647 = vsel %vm644, %v646, %v642
        %v648 = vmul.f32 %v556, %v647
        %v649 = vrcp.pop %v579
        %v650 = vmul.f32 %v579, %v649
        %v651 = vsub.f32 1.0, %v650
        %v652 = vmul.f32 %v649, %v651
        %v653 = vadd.f32 %v649, %v652
        %vm654 = vweird.f32 %v579
        %vm655 = vweird.f32 %v649
        %vm656 = vmor %vm654, %vm655
        %v657 = vsel %vm656, %v649, %v653
        %v658 = vand.u32 2147483647, %v579
        %vm659 = vcmp.eq.f32.partialorder %v658, 8.507059e+37
        %v660 = vand.u32 %v579, 2147483648
        %v661 = vor.u32 1.1754944e-38, %v660
        %v662 = vsel %vm659, %v661, %v657
        %v663 = vmul.f32 %v558, %v662
        %v664 = vrcp.pop %v582
        %v665 = vmul.f32 %v582, %v664
        %v666 = vsub.f32 1.0, %v665
        %v667 = vmul.f32 %v664, %v666
        %v668 = vadd.f32 %v664, %v667
        %vm669 = vweird.f32 %v582
        %vm670 = vweird.f32 %v664
        %vm671 = vmor %vm669, %vm670
        %v672 = vsel %vm671, %v664, %v668
        %v673 = vand.u32 2147483647, %v582
        %vm674 = vcmp.eq.f32.partialorder %v673, 8.507059e+37
        %v675 = vand.u32 %v582, 2147483648
        %v676 = vor.u32 1.1754944e-38, %v675
        %v677 = vsel %vm674, %v676, %v672
        %v678 = vmul.f32 %v560, %v677
        %v679 = vrcp.pop %v585
        %v680 = vmul.f32 %v585, %v679
        %v681 = vsub.f32 1.0, %v680
        %v682 = vmul.f32 %v679, %v681
        %v683 = vadd.f32 %v679, %v682
        %vm684 = vweird.f32 %v585
        %vm685 = vweird.f32 %v679
        %vm686 = vmor %vm684, %vm685
        %v687 = vsel %vm686, %v679, %v683
        %v688 = vand.u32 2147483647, %v585
        %vm689 = vcmp.eq.f32.partialorder %v688, 8.507059e+37
        %v690 = vand.u32 %v585, 2147483648
        %v691 = vor.u32 1.1754944e-38, %v690
        %v692 = vsel %vm689, %v691, %v687
        %v693 = vmul.f32 %v562, %v692
        %v694 = vrcp.pop %v588
        %v695 = vmul.f32 %v588, %v694
        %v696 = vsub.f32 1.0, %v695
        %v697 = vmul.f32 %v694, %v696
        %v698 = vadd.f32 %v694, %v697
        %vm699 = vweird.f32 %v588
        %vm700 = vweird.f32 %v694
        %vm701 = vmor %vm699, %vm700
        %v702 = vsel %vm701, %v694, %v698
        %v703 = vand.u32 2147483647, %v588
        %vm704 = vcmp.eq.f32.partialorder %v703, 8.507059e+37
        %v705 = vand.u32 %v588, 2147483648
        %v706 = vor.u32 1.1754944e-38, %v705
        %v707 = vsel %vm704, %v706, %v702
        %v708 = vmul.f32 %v564, %v707
        %709 = vrot.lane.b32.xlu0 %v281, 64
        %v710 = vpop.permute.xlu0 %709
        %v713 = vsel %vm302, %v603, 0
        %715 = vmatpush.msra.mxu0 0.0
        %716 = vmatpush.msra.mxu0 0.0
        %717 = vmatpush.msra.mxu0 0.0
        %718 = vmatpush.msra.mxu0 0.0
        %719 = vmatpush.msra.mxu0 0.0
        %720 = vmatpush.msra.mxu0 0.0
        %721 = vmatpush.msra.mxu0 0.0
        %722 = vmatpush.msra.mxu0 0.0
        %723 = vmatpush.msra.mxu0 0.0
        %724 = vmatpush.msra.mxu0 0.0
        %725 = vmatpush.msra.mxu0 0.0
        %726 = vmatpush.msra.mxu0 0.0
        %727 = vmatpush.msra.mxu0 0.0
        %728 = vmatpush.msra.mxu0 0.0
        %729 = vmatpush.msra.mxu0 0.0
        %730 = vmatpush.msra.mxu0 %v710
        %731 = vmatmul.f32.gmra.mxu0 %v713
        %v732 = vpop.f32.mrf.mxu0
        %v733 = vadd.f32 0.0, %v732
        %734 = vdwg.mxu0
        %735 = vrot.lane.b32.xlu0 %v284, 64
        %v736 = vpop.permute.xlu0 %735
        %v739 = vsel %vm302, %v618, 0
        %741 = vmatpush.msra.mxu0 0.0
        %742 = vmatpush.msra.mxu0 0.0
        %743 = vmatpush.msra.mxu0 0.0
        %744 = vmatpush.msra.mxu0 0.0
        %745 = vmatpush.msra.mxu0 0.0
        %746 = vmatpush.msra.mxu0 0.0
        %747 = vmatpush.msra.mxu0 0.0
        %748 = vmatpush.msra.mxu0 0.0
        %749 = vmatpush.msra.mxu0 0.0
        %750 = vmatpush.msra.mxu0 0.0
        %751 = vmatpush.msra.mxu0 0.0
        %752 = vmatpush.msra.mxu0 0.0
        %753 = vmatpush.msra.mxu0 0.0
        %754 = vmatpush.msra.mxu0 0.0
        %755 = vmatpush.msra.mxu0 0.0
        %756 = vmatpush.msra.mxu0 %v736
        %757 = vmatmul.f32.gmra.mxu0 %v739
        %v758 = vpop.f32.mrf.mxu0
        %v759 = vadd.f32 0.0, %v758
        %760 = vdwg.mxu0
        %761 = vrot.lane.b32.xlu0 %v289, 64
        %v762 = vpop.permute.xlu0 %761
        %v765 = vsel %vm302, %v633, 0
        %767 = vmatpush.msra.mxu0 0.0
        %768 = vmatpush.msra.mxu0 0.0
        %769 = vmatpush.msra.mxu0 0.0
        %770 = vmatpush.msra.mxu0 0.0
        %771 = vmatpush.msra.mxu0 0.0
        %772 = vmatpush.msra.mxu0 0.0
        %773 = vmatpush.msra.mxu0 0.0
        %774 = vmatpush.msra.mxu0 0.0
        %775 = vmatpush.msra.mxu0 0.0
        %776 = vmatpush.msra.mxu0 0.0
        %777 = vmatpush.msra.mxu0 0.0
        %778 = vmatpush.msra.mxu0 0.0
        %779 = vmatpush.msra.mxu0 0.0
        %780 = vmatpush.msra.mxu0 0.0
        %781 = vmatpush.msra.mxu0 0.0
        %782 = vmatpush.msra.mxu0 %v762
        %783 = vmatmul.f32.gmra.mxu0 %v765
        %v784 = vpop.f32.mrf.mxu0
        %v785 = vadd.f32 0.0, %v784
        %786 = vdwg.mxu0
        %787 = vrot.lane.b32.xlu0 %v291, 64
        %v788 = vpop.permute.xlu0 %787
        %v791 = vsel %vm302, %v648, 0
        %793 = vmatpush.msra.mxu0 0.0
        %794 = vmatpush.msra.mxu0 0.0
        %795 = vmatpush.msra.mxu0 0.0
        %796 = vmatpush.msra.mxu0 0.0
        %797 = vmatpush.msra.mxu0 0.0
        %798 = vmatpush.msra.mxu0 0.0
        %799 = vmatpush.msra.mxu0 0.0
        %800 = vmatpush.msra.mxu0 0.0
        %801 = vmatpush.msra.mxu0 0.0
        %802 = vmatpush.msra.mxu0 0.0
        %803 = vmatpush.msra.mxu0 0.0
        %804 = vmatpush.msra.mxu0 0.0
        %805 = vmatpush.msra.mxu0 0.0
        %806 = vmatpush.msra.mxu0 0.0
        %807 = vmatpush.msra.mxu0 0.0
        %808 = vmatpush.msra.mxu0 %v788
        %809 = vmatmul.f32.gmra.mxu0 %v791
        %v810 = vpop.f32.mrf.mxu0
        %v811 = vadd.f32 0.0, %v810
        %812 = vdwg.mxu0
        %813 = vrot.lane.b32.xlu0 %v293, 64
        %v814 = vpop.permute.xlu0 %813
        %v817 = vsel %vm302, %v663, 0
        %819 = vmatpush.msra.mxu0 0.0
        %820 = vmatpush.msra.mxu0 0.0
        %821 = vmatpush.msra.mxu0 0.0
        %822 = vmatpush.msra.mxu0 0.0
        %823 = vmatpush.msra.mxu0 0.0
        %824 = vmatpush.msra.mxu0 0.0
        %825 = vmatpush.msra.mxu0 0.0
        %826 = vmatpush.msra.mxu0 0.0
        %827 = vmatpush.msra.mxu0 0.0
        %828 = vmatpush.msra.mxu0 0.0
        %829 = vmatpush.msra.mxu0 0.0
        %830 = vmatpush.msra.mxu0 0.0
        %831 = vmatpush.msra.mxu0 0.0
        %832 = vmatpush.msra.mxu0 0.0
        %833 = vmatpush.msra.mxu0 0.0
        %834 = vmatpush.msra.mxu0 %v814
        %835 = vmatmul.f32.gmra.mxu0 %v817
        %v836 = vpop.f32.mrf.mxu0
        %v837 = vadd.f32 0.0, %v836
        %838 = vdwg.mxu0
        %839 = vrot.lane.b32.xlu0 %v295, 64
        %v840 = vpop.permute.xlu0 %839
        %v843 = vsel %vm302, %v678, 0
        %845 = vmatpush.msra.mxu0 0.0
        %846 = vmatpush.msra.mxu0 0.0
        %847 = vmatpush.msra.mxu0 0.0
        %848 = vmatpush.msra.mxu0 0.0
        %849 = vmatpush.msra.mxu0 0.0
        %850 = vmatpush.msra.mxu0 0.0
        %851 = vmatpush.msra.mxu0 0.0
        %852 = vmatpush.msra.mxu0 0.0
        %853 = vmatpush.msra.mxu0 0.0
        %854 = vmatpush.msra.mxu0 0.0
        %855 = vmatpush.msra.mxu0 0.0
        %856 = vmatpush.msra.mxu0 0.0
        %857 = vmatpush.msra.mxu0 0.0
        %858 = vmatpush.msra.mxu0 0.0
        %859 = vmatpush.msra.mxu0 0.0
        %860 = vmatpush.msra.mxu0 %v840
        %861 = vmatmul.f32.gmra.mxu0 %v843
        %v862 = vpop.f32.mrf.mxu0
        %v863 = vadd.f32 0.0, %v862
        %864 = vdwg.mxu0
        %865 = vrot.lane.b32.xlu0 %v297, 64
        %v866 = vpop.permute.xlu0 %865
        %v869 = vsel %vm302, %v693, 0
        %871 = vmatpush.msra.mxu0 0.0
        %872 = vmatpush.msra.mxu0 0.0
        %873 = vmatpush.msra.mxu0 0.0
        %874 = vmatpush.msra.mxu0 0.0
        %875 = vmatpush.msra.mxu0 0.0
        %876 = vmatpush.msra.mxu0 0.0
        %877 = vmatpush.msra.mxu0 0.0
        %878 = vmatpush.msra.mxu0 0.0
        %879 = vmatpush.msra.mxu0 0.0
        %880 = vmatpush.msra.mxu0 0.0
        %881 = vmatpush.msra.mxu0 0.0
        %882 = vmatpush.msra.mxu0 0.0
        %883 = vmatpush.msra.mxu0 0.0
        %884 = vmatpush.msra.mxu0 0.0
        %885 = vmatpush.msra.mxu0 0.0
        %886 = vmatpush.msra.mxu0 %v866
        %887 = vmatmul.f32.gmra.mxu0 %v869
        %v888 = vpop.f32.mrf.mxu0
        %v889 = vadd.f32 0.0, %v888
        %890 = vdwg.mxu0
        %891 = vrot.lane.b32.xlu0 %v299, 64
        %v892 = vpop.permute.xlu0 %891
        %v895 = vsel %vm302, %v708, 0
        %897 = vmatpush.msra.mxu0 0.0
        %898 = vmatpush.msra.mxu0 0.0
        %899 = vmatpush.msra.mxu0 0.0
        %900 = vmatpush.msra.mxu0 0.0
        %901 = vmatpush.msra.mxu0 0.0
        %902 = vmatpush.msra.mxu0 0.0
        %903 = vmatpush.msra.mxu0 0.0
        %904 = vmatpush.msra.mxu0 0.0
        %905 = vmatpush.msra.mxu0 0.0
        %906 = vmatpush.msra.mxu0 0.0
        %907 = vmatpush.msra.mxu0 0.0
        %908 = vmatpush.msra.mxu0 0.0
        %909 = vmatpush.msra.mxu0 0.0
        %910 = vmatpush.msra.mxu0 0.0
        %911 = vmatpush.msra.mxu0 0.0
        %912 = vmatpush.msra.mxu0 %v892
        %913 = vmatmul.f32.gmra.mxu0 %v895
        %v914 = vpop.f32.mrf.mxu0
        %v915 = vadd.f32 0.0, %v914
        %916 = vdwg.mxu0
        %919 = vrot.lane.b32.xlu0 %v785, 8
        %v920 = vpop.permute.xlu0 %919
        %921 = vrot.lane.b32.xlu0 %v811, 8
        %v922 = vpop.permute.xlu0 %921
        %927 = vrot.lane.b32.xlu0 %v837, 16
        %v928 = vpop.permute.xlu0 %927
        %929 = vrot.lane.b32.xlu0 %v863, 16
        %v930 = vpop.permute.xlu0 %929
        %935 = vrot.lane.b32.xlu0 %v889, 24
        %v936 = vpop.permute.xlu0 %935
        %937 = vrot.lane.b32.xlu0 %v915, 24
        %v938 = vpop.permute.xlu0 %937
        %v941 = vsel %vm302, %v733, %v920
        %v942 = vsel %vm302, %v759, %v922
        %vm943 = vcmask 130048
        %v944 = vsel %vm943, %v941, %v928
        %v945 = vsel %vm943, %v942, %v930
        %vm946 = vcmask 195584
        %v947 = vsel %vm946, %v944, %v936
        %v948 = vsel %vm946, %v945, %v938
        %v949 = vperm.slane %v253, 2
        %954 = vrot.lane.b32.xlu0 %v235, 32
        %v955 = vpop.permute.xlu0 %954
        %956 = vrot.lane.b32.xlu0 %v237, 32
        %v957 = vpop.permute.xlu0 %956
        %958 = vrot.lane.b32.xlu0 %v239, 32
        %v959 = vpop.permute.xlu0 %958
        %960 = vrot.lane.b32.xlu0 %v241, 32
        %v961 = vpop.permute.xlu0 %960
        %v967 = vsel %vm256, %v947, 0
        %v970 = vsel %vm256, %v948, 0
        %972 = vmatpush.msra.mxu0 0.0
        %973 = vmatpush.msra.mxu0 0.0
        %974 = vmatpush.msra.mxu0 0.0
        %975 = vmatpush.msra.mxu0 0.0
        %976 = vmatpush.msra.mxu0 0.0
        %977 = vmatpush.msra.mxu0 0.0
        %978 = vmatpush.msra.mxu0 0.0
        %979 = vmatpush.msra.mxu0 0.0
        %980 = vmatpush.msra.mxu0 0.0
        %981 = vmatpush.msra.mxu0 0.0
        %982 = vmatpush.msra.mxu0 0.0
        %983 = vmatpush.msra.mxu0 0.0
        %984 = vmatpush.msra.mxu0 %v961
        %985 = vmatpush.msra.mxu0 %v959
        %986 = vmatpush.msra.mxu0 %v957
        %987 = vmatpush.msra.mxu0 %v955
        %988 = vmatmul.f32.gmra.mxu0 %v967
        %v989 = vpop.f32.mrf.mxu0
        %v990 = vadd.f32 %v949, %v989
        %991 = vmatmul.f32.gmra.mxu0 %v970
        %v992 = vpop.f32.mrf.mxu0
        %v993 = vadd.f32 %v949, %v992
        %994 = vdwg.mxu0
        %v995 = vadd.f32 %v990, %v233
        %v996 = vadd.f32 %v993, %v234
        %v997 = vsel %vm256, %v995, 0.0
        %998 = vadd.xlane.f32.xlu0 %v997
        %v999 = vpop.xlane.xlu0 %998
        %v1000 = vsel %vm256, %v996, 0.0
        %1001 = vadd.xlane.f32.xlu0 %v1000
        %v1002 = vpop.xlane.xlu0 %1001
        %v1003 = vrcp.pop 32.0
        %v1004 = vmul.f32 32.0, %v1003
        %v1005 = vsub.f32 1.0, %v1004
        %v1006 = vmul.f32 %v1003, %v1005
        %v1007 = vadd.f32 %v1003, %v1006
        %vm1008 = vweird.f32 %v1003
        %v1009 = vsel %vm1008, %v1003, %v1007
        %v1010 = vmul.f32 %v999, %v1009
        %v1011 = vmul.f32 %v1002, %v1009
        %v1012 = vsub.f32 %v995, %v1010
        %v1013 = vsub.f32 %v996, %v1011
        %v1014 = vmul.f32 %v1012, %v1012
        %v1015 = vmul.f32 %v1013, %v1013
        %v1016 = vsel %vm256, %v1014, 0.0
        %1017 = vadd.xlane.f32.xlu0 %v1016
        %v1018 = vpop.xlane.xlu0 %1017
        %v1019 = vsel %vm256, %v1015, 0.0
        %1020 = vadd.xlane.f32.xlu0 %v1019
        %v1021 = vpop.xlane.xlu0 %1020
        %v1022 = vmul.f32 %v1018, %v1009
        %v1023 = vmul.f32 %v1021, %v1009
        %v1024 = vadd.f32 %v1022, 1e-12
        %v1025 = vadd.f32 %v1023, 1e-12
        %v1026 = vrsqrt.pop %v1024
        %v1027 = vmul.f32 %v1026, %v1024
        %v1028 = vmul.f32 %v1027, %v1026
        %v1029 = vmul.f32 0.5, %v1028
        %v1030 = vsub.f32 1.5, %v1029
        %v1031 = vmul.f32 %v1026, %v1030
        %vm1032 = vweird.f32 %v1024
        %vm1033 = vweird.f32 %v1026
        %vm1034 = vmor %vm1032, %vm1033
        %v1035 = vsel %vm1034, %v1026, %v1031
        %v1036 = vrsqrt.pop %v1025
        %v1037 = vmul.f32 %v1036, %v1025
        %v1038 = vmul.f32 %v1037, %v1036
        %v1039 = vmul.f32 0.5, %v1038
        %v1040 = vsub.f32 1.5, %v1039
        %v1041 = vmul.f32 %v1036, %v1040
        %vm1042 = vweird.f32 %v1025
        %vm1043 = vweird.f32 %v1036
        %vm1044 = vmor %vm1042, %vm1043
        %v1045 = vsel %vm1044, %v1036, %v1041
        %v1046 = vmul.f32 %v1012, %v1035
        %v1047 = vmul.f32 %v1013, %v1045
        %v1048 = vperm.slane %v253, 3
        %v1049 = vmul.f32 %v1046, %v1048
        %v1050 = vmul.f32 %v1047, %v1048
        %v1051 = vperm.slane %v253, 4
        %v1052 = vadd.f32 %v1049, %v1051
        %v1053 = vadd.f32 %v1050, %v1051
        %v1054 = vperm.slane %v253, 5
        %v1056 = vsel %vm256, %v1052, 0
        %v1059 = vsel %vm256, %v1053, 0
        %1061 = vmatpush.msra.mxu0 0.0
        %1062 = vmatpush.msra.mxu0 0.0
        %1063 = vmatpush.msra.mxu0 0.0
        %1064 = vmatpush.msra.mxu0 0.0
        %1065 = vmatpush.msra.mxu0 0.0
        %1066 = vmatpush.msra.mxu0 0.0
        %1067 = vmatpush.msra.mxu0 0.0
        %1068 = vmatpush.msra.mxu0 0.0
        %1069 = vmatpush.msra.mxu0 0.0
        %1070 = vmatpush.msra.mxu0 0.0
        %1071 = vmatpush.msra.mxu0 0.0
        %1072 = vmatpush.msra.mxu0 0.0
        %1073 = vmatpush.msra.mxu0 %v242
        %1074 = vmatpush.msra.mxu0 %v240
        %1075 = vmatpush.msra.mxu0 %v238
        %1076 = vmatpush.msra.mxu0 %v236
        %1077 = vmatmul.f32.gmra.mxu0 %v1056
        %v1078 = vpop.f32.mrf.mxu0
        %v1079 = vadd.f32 %v1054, %v1078
        %1080 = vmatmul.f32.gmra.mxu0 %v1059
        %v1081 = vpop.f32.mrf.mxu0
        %v1082 = vadd.f32 %v1054, %v1081
        %1083 = vdwg.mxu0
        %v1084 = vmul.f32 %v1079, 0.5
        %v1085 = vmul.f32 %v1082, 0.5
        %v1086 = vmul.f32 %v1079, 0.70710677
        %v1087 = vmul.f32 %v1082, 0.70710677
        %v1088 = vmul.f32 %v1086, %v1086
        %v1089 = vmin.f32 16.0, %v1088
        %v1090 = vmul.f32 %v1089, 2.1237322e-06
        %v1091 = vadd.f32 %v1090, 0.00028619796
        %v1092 = vmul.f32 %v1089, %v1091
        %v1093 = vadd.f32 %v1092, 0.0036580483
        %v1094 = vmul.f32 %v1089, %v1093
        %v1095 = vadd.f32 %v1094, 0.05243302
        %v1096 = vmul.f32 %v1089, %v1095
        %v1097 = vadd.f32 %v1096, 0.18741608
        %v1098 = vmul.f32 %v1089, %v1097
        %v1099 = vadd.f32 %v1098, 1.1283791
        %v1100 = vmul.f32 %v1086, %v1099
        %v1101 = vmul.f32 %v1089, 3.8918573e-05
        %v1102 = vadd.f32 %v1101, 0.001143296
        %v1103 = vmul.f32 %v1089, %v1102
        %v1104 = vadd.f32 %v1103, 0.014752088
        %v1105 = vmul.f32 %v1089, %v1104
        %v1106 = vadd.f32 %v1105, 0.112945676
        %v1107 = vmul.f32 %v1089, %v1106
        %v1108 = vadd.f32 %v1107, 0.4994258
        %v1109 = vmul.f32 %v1089, %v1108
        %v1110 = vadd.f32 %v1109, 1.0
        %v1111 = vrcp.pop %v1110
        %v1112 = vmul.f32 %v1110, %v1111
        %v1113 = vsub.f32 1.0, %v1112
        %v1114 = vmul.f32 %v1111, %v1113
        %v1115 = vadd.f32 %v1111, %v1114
        %vm1116 = vweird.f32 %v1110
        %vm1117 = vweird.f32 %v1111
        %vm1118 = vmor %vm1116, %vm1117
        %v1119 = vsel %vm1118, %v1111, %v1115
        %v1120 = vand.u32 2147483647, %v1110
        %vm1121 = vcmp.eq.f32.partialorder %v1120, 8.507059e+37
        %v1122 = vand.u32 %v1110, 2147483648
        %v1123 = vor.u32 1.1754944e-38, %v1122
        %v1124 = vsel %vm1121, %v1123, %v1119
        %v1125 = vmul.f32 %v1100, %v1124
        %v1126 = vmin.f32 %v1125, 1.0
        %v1127 = vmax.f32 %v1126, -1.0
        %v1128 = vmul.f32 %v1087, %v1087
        %v1129 = vmin.f32 16.0, %v1128
        %v1130 = vmul.f32 %v1129, 2.1237322e-06
        %v1131 = vadd.f32 %v1130, 0.00028619796
        %v1132 = vmul.f32 %v1129, %v1131
        %v1133 = vadd.f32 %v1132, 0.0036580483
        %v1134 = vmul.f32 %v1129, %v1133
        %v1135 = vadd.f32 %v1134, 0.05243302
        %v1136 = vmul.f32 %v1129, %v1135
        %v1137 = vadd.f32 %v1136, 0.18741608
        %v1138 = vmul.f32 %v1129, %v1137
        %v1139 = vadd.f32 %v1138, 1.1283791
        %v1140 = vmul.f32 %v1087, %v1139
        %v1141 = vmul.f32 %v1129, 3.8918573e-05
        %v1142 = vadd.f32 %v1141, 0.001143296
        %v1143 = vmul.f32 %v1129, %v1142
        %v1144 = vadd.f32 %v1143, 0.014752088
        %v1145 = vmul.f32 %v1129, %v1144
        %v1146 = vadd.f32 %v1145, 0.112945676
        %v1147 = vmul.f32 %v1129, %v1146
        %v1148 = vadd.f32 %v1147, 0.4994258
        %v1149 = vmul.f32 %v1129, %v1148
        %v1150 = vadd.f32 %v1149, 1.0
        %v1151 = vrcp.pop %v1150
        %v1152 = vmul.f32 %v1150, %v1151
        %v1153 = vsub.f32 1.0, %v1152
        %v1154 = vmul.f32 %v1151, %v1153
        %v1155 = vadd.f32 %v1151, %v1154
        %vm1156 = vweird.f32 %v1150
        %vm1157 = vweird.f32 %v1151
        %vm1158 = vmor %vm1156, %vm1157
        %v1159 = vsel %vm1158, %v1151, %v1155
        %v1160 = vand.u32 2147483647, %v1150
        %vm1161 = vcmp.eq.f32.partialorder %v1160, 8.507059e+37
        %v1162 = vand.u32 %v1150, 2147483648
        %v1163 = vor.u32 1.1754944e-38, %v1162
        %v1164 = vsel %vm1161, %v1163, %v1159
        %v1165 = vmul.f32 %v1140, %v1164
        %v1166 = vmin.f32 %v1165, 1.0
        %v1167 = vmax.f32 %v1166, -1.0
        %v1168 = vadd.f32 %v1127, 1.0
        %v1169 = vadd.f32 %v1167, 1.0
        %v1170 = vmul.f32 %v1084, %v1168
        %v1171 = vmul.f32 %v1085, %v1169
        %v1172 = vperm.slane %v253, 6
        %v1174 = vsel %vm302, %v1170, 0
        %v1177 = vsel %vm302, %v1171, 0
        %1179 = vmatpush.msra.mxu0 0.0
        %1180 = vmatpush.msra.mxu0 0.0
        %1181 = vmatpush.msra.mxu0 0.0
        %1182 = vmatpush.msra.mxu0 0.0
        %1183 = vmatpush.msra.mxu0 0.0
        %1184 = vmatpush.msra.mxu0 0.0
        %1185 = vmatpush.msra.mxu0 0.0
        %1186 = vmatpush.msra.mxu0 0.0
        %1187 = vmatpush.msra.mxu0 0.0
        %1188 = vmatpush.msra.mxu0 0.0
        %1189 = vmatpush.msra.mxu0 0.0
        %1190 = vmatpush.msra.mxu0 0.0
        %1191 = vmatpush.msra.mxu0 0.0
        %1192 = vmatpush.msra.mxu0 0.0
        %1193 = vmatpush.msra.mxu0 0.0
        %1194 = vmatpush.msra.mxu0 %v243
        %1195 = vmatmul.f32.gmra.mxu0 %v1174
        %v1196 = vpop.f32.mrf.mxu0
        %v1197 = vadd.f32 %v1172, %v1196
        %1198 = vmatmul.f32.gmra.mxu0 %v1177
        %v1199 = vpop.f32.mrf.mxu0
        %v1200 = vadd.f32 %v1172, %v1199
        %1201 = vdwg.mxu0
        %v1202 = vadd.f32 %v1052, %v1197
        %v1203 = vadd.f32 %v1053, %v1200
        %v1204 = vperm.slane %v253, 1
        %1209 = vrot.lane.b32.xlu0 %v236, 120
        %v1210 = vpop.permute.xlu0 %1209
        %1211 = vrot.lane.b32.xlu0 %v238, 120
        %v1212 = vpop.permute.xlu0 %1211
        %1213 = vrot.lane.b32.xlu0 %v240, 120
        %v1214 = vpop.permute.xlu0 %1213
        %1215 = vrot.lane.b32.xlu0 %v242, 120
        %v1216 = vpop.permute.xlu0 %1215
        %v1222 = vsel %vm256, %v1202, 0
        %v1225 = vsel %vm256, %v1203, 0
        %1227 = vmatpush.msra.mxu0 0.0
        %1228 = vmatpush.msra.mxu0 0.0
        %1229 = vmatpush.msra.mxu0 0.0
        %1230 = vmatpush.msra.mxu0 0.0
        %1231 = vmatpush.msra.mxu0 0.0
        %1232 = vmatpush.msra.mxu0 0.0
        %1233 = vmatpush.msra.mxu0 0.0
        %1234 = vmatpush.msra.mxu0 0.0
        %1235 = vmatpush.msra.mxu0 0.0
        %1236 = vmatpush.msra.mxu0 0.0
        %1237 = vmatpush.msra.mxu0 0.0
        %1238 = vmatpush.msra.mxu0 0.0
        %1239 = vmatpush.msra.mxu0 %v1216
        %1240 = vmatpush.msra.mxu0 %v1214
        %1241 = vmatpush.msra.mxu0 %v1212
        %1242 = vmatpush.msra.mxu0 %v1210
        %1243 = vmatmul.f32.gmra.mxu0 %v1222
        %v1244 = vpop.f32.mrf.mxu0
        %v1245 = vadd.f32 %v1204, %v1244
        %1246 = vmatmul.f32.gmra.mxu0 %v1225
        %v1247 = vpop.f32.mrf.mxu0
        %v1248 = vadd.f32 %v1204, %v1247
        %1249 = vdwg.mxu0
        %v1250 = vmul.f32 %v1245, 0.5
        %v1251 = vmul.f32 %v1248, 0.5
        %v1252 = vmul.f32 %v1245, 0.70710677
        %v1253 = vmul.f32 %v1248, 0.70710677
        %v1254 = vmul.f32 %v1252, %v1252
        %v1255 = vmin.f32 16.0, %v1254
        %v1256 = vmul.f32 %v1255, 2.1237322e-06
        %v1257 = vadd.f32 %v1256, 0.00028619796
        %v1258 = vmul.f32 %v1255, %v1257
        %v1259 = vadd.f32 %v1258, 0.0036580483
        %v1260 = vmul.f32 %v1255, %v1259
        %v1261 = vadd.f32 %v1260, 0.05243302
        %v1262 = vmul.f32 %v1255, %v1261
        %v1263 = vadd.f32 %v1262, 0.18741608
        %v1264 = vmul.f32 %v1255, %v1263
        %v1265 = vadd.f32 %v1264, 1.1283791
        %v1266 = vmul.f32 %v1252, %v1265
        %v1267 = vmul.f32 %v1255, 3.8918573e-05
        %v1268 = vadd.f32 %v1267, 0.001143296
        %v1269 = vmul.f32 %v1255, %v1268
        %v1270 = vadd.f32 %v1269, 0.014752088
        %v1271 = vmul.f32 %v1255, %v1270
        %v1272 = vadd.f32 %v1271, 0.112945676
        %v1273 = vmul.f32 %v1255, %v1272
        %v1274 = vadd.f32 %v1273, 0.4994258
        %v1275 = vmul.f32 %v1255, %v1274
        %v1276 = vadd.f32 %v1275, 1.0
        %v1277 = vrcp.pop %v1276
        %v1278 = vmul.f32 %v1276, %v1277
        %v1279 = vsub.f32 1.0, %v1278
        %v1280 = vmul.f32 %v1277, %v1279
        %v1281 = vadd.f32 %v1277, %v1280
        %vm1282 = vweird.f32 %v1276
        %vm1283 = vweird.f32 %v1277
        %vm1284 = vmor %vm1282, %vm1283
        %v1285 = vsel %vm1284, %v1277, %v1281
        %v1286 = vand.u32 2147483647, %v1276
        %vm1287 = vcmp.eq.f32.partialorder %v1286, 8.507059e+37
        %v1288 = vand.u32 %v1276, 2147483648
        %v1289 = vor.u32 1.1754944e-38, %v1288
        %v1290 = vsel %vm1287, %v1289, %v1285
        %v1291 = vmul.f32 %v1266, %v1290
        %v1292 = vmin.f32 %v1291, 1.0
        %v1293 = vmax.f32 %v1292, -1.0
        %v1294 = vmul.f32 %v1253, %v1253
        %v1295 = vmin.f32 16.0, %v1294
        %v1296 = vmul.f32 %v1295, 2.1237322e-06
        %v1297 = vadd.f32 %v1296, 0.00028619796
        %v1298 = vmul.f32 %v1295, %v1297
        %v1299 = vadd.f32 %v1298, 0.0036580483
        %v1300 = vmul.f32 %v1295, %v1299
        %v1301 = vadd.f32 %v1300, 0.05243302
        %v1302 = vmul.f32 %v1295, %v1301
        %v1303 = vadd.f32 %v1302, 0.18741608
        %v1304 = vmul.f32 %v1295, %v1303
        %v1305 = vadd.f32 %v1304, 1.1283791
        %v1306 = vmul.f32 %v1253, %v1305
        %v1307 = vmul.f32 %v1295, 3.8918573e-05
        %v1308 = vadd.f32 %v1307, 0.001143296
        %v1309 = vmul.f32 %v1295, %v1308
        %v1310 = vadd.f32 %v1309, 0.014752088
        %v1311 = vmul.f32 %v1295, %v1310
        %v1312 = vadd.f32 %v1311, 0.112945676
        %v1313 = vmul.f32 %v1295, %v1312
        %v1314 = vadd.f32 %v1313, 0.4994258
        %v1315 = vmul.f32 %v1295, %v1314
        %v1316 = vadd.f32 %v1315, 1.0
        %v1317 = vrcp.pop %v1316
        %v1318 = vmul.f32 %v1316, %v1317
        %v1319 = vsub.f32 1.0, %v1318
        %v1320 = vmul.f32 %v1317, %v1319
        %v1321 = vadd.f32 %v1317, %v1320
        %vm1322 = vweird.f32 %v1316
        %vm1323 = vweird.f32 %v1317
        %vm1324 = vmor %vm1322, %vm1323
        %v1325 = vsel %vm1324, %v1317, %v1321
        %v1326 = vand.u32 2147483647, %v1316
        %vm1327 = vcmp.eq.f32.partialorder %v1326, 8.507059e+37
        %v1328 = vand.u32 %v1316, 2147483648
        %v1329 = vor.u32 1.1754944e-38, %v1328
        %v1330 = vsel %vm1327, %v1329, %v1325
        %v1331 = vmul.f32 %v1306, %v1330
        %v1332 = vmin.f32 %v1331, 1.0
        %v1333 = vmax.f32 %v1332, -1.0
        %v1334 = vadd.f32 %v1293, 1.0
        %v1335 = vadd.f32 %v1333, 1.0
        %v1336 = vmul.f32 %v1250, %v1334
        %v1337 = vmul.f32 %v1251, %v1335
        %v1338 = vperm.slane %v253, 7
        %vm1339 = vcmask 523264
        %v1341 = vsel %vm1339, %v1336, 0
        %v1344 = vsel %vm1339, %v1337, 0
        %1346 = vmatpush.msra.mxu0 0.0
        %1347 = vmatpush.msra.mxu0 0.0
        %1348 = vmatpush.msra.mxu0 0.0
        %1349 = vmatpush.msra.mxu0 0.0
        %1350 = vmatpush.msra.mxu0 0.0
        %1351 = vmatpush.msra.mxu0 0.0
        %1352 = vmatpush.msra.mxu0 0.0
        %1353 = vmatpush.msra.mxu0 0.0
        %1354 = vmatpush.msra.mxu0 %v251
        %1355 = vmatpush.msra.mxu0 %v250
        %1356 = vmatpush.msra.mxu0 %v249
        %1357 = vmatpush.msra.mxu0 %v248
        %1358 = vmatpush.msra.mxu0 %v247
        %1359 = vmatpush.msra.mxu0 %v246
        %1360 = vmatpush.msra.mxu0 %v245
        %1361 = vmatpush.msra.mxu0 %v244
        %1362 = vmatmul.f32.gmra.mxu0 %v1341
        %v1363 = vpop.f32.mrf.mxu0
        %v1364 = vadd.f32 %v1338, %v1363
        %1365 = vmatmul.f32.gmra.mxu0 %v1344
        %v1366 = vpop.f32.mrf.mxu0
        %v1367 = vadd.f32 %v1338, %v1366
        %1368 = vdwg.mxu0
        %v1369 = vadd.f32 %v1364, %v1202
        %v1370 = vadd.f32 %v1367, %v1203
        %v1371 = vsel %vm256, %v1369, 0.0
        %1372 = vadd.xlane.f32.xlu0 %v1371
        %v1373 = vpop.xlane.xlu0 %1372
        %v1374 = vsel %vm256, %v1370, 0.0
        %1375 = vadd.xlane.f32.xlu0 %v1374
        %v1376 = vpop.xlane.xlu0 %1375
        %v1377 = vmul.f32 %v1373, %v1009
        %v1378 = vmul.f32 %v1376, %v1009
        %v1379 = vsub.f32 %v1369, %v1377
        %v1380 = vsub.f32 %v1370, %v1378
        %v1381 = vmul.f32 %v1379, %v1379
        %v1382 = vmul.f32 %v1380, %v1380
        %v1383 = vsel %vm256, %v1381, 0.0
        %1384 = vadd.xlane.f32.xlu0 %v1383
        %v1385 = vpop.xlane.xlu0 %1384
        %v1386 = vsel %vm256, %v1382, 0.0
        %1387 = vadd.xlane.f32.xlu0 %v1386
        %v1388 = vpop.xlane.xlu0 %1387
        %v1389 = vmul.f32 %v1385, %v1009
        %v1390 = vmul.f32 %v1388, %v1009
        %v1391 = vadd.f32 %v1389, 1e-12
        %v1392 = vadd.f32 %v1390, 1e-12
        %v1393 = vrsqrt.pop %v1391
        %v1394 = vmul.f32 %v1393, %v1391
        %v1395 = vmul.f32 %v1394, %v1393
        %v1396 = vmul.f32 0.5, %v1395
        %v1397 = vsub.f32 1.5, %v1396
        %v1398 = vmul.f32 %v1393, %v1397
        %vm1399 = vweird.f32 %v1391
        %vm1400 = vweird.f32 %v1393
        %vm1401 = vmor %vm1399, %vm1400
        %v1402 = vsel %vm1401, %v1393, %v1398
        %v1403 = vrsqrt.pop %v1392
        %v1404 = vmul.f32 %v1403, %v1392
        %v1405 = vmul.f32 %v1404, %v1403
        %v1406 = vmul.f32 0.5, %v1405
        %v1407 = vsub.f32 1.5, %v1406
        %v1408 = vmul.f32 %v1403, %v1407
        %vm1409 = vweird.f32 %v1392
        %vm1410 = vweird.f32 %v1403
        %vm1411 = vmor %vm1409, %vm1410
        %v1412 = vsel %vm1411, %v1403, %v1408
        %v1413 = vmul.f32 %v1379, %v1402
        %v1414 = vmul.f32 %v1380, %v1412
        %v1415 = vperm.slane %v254, 0
        %v1416 = vmul.f32 %v1413, %v1415
        %v1417 = vmul.f32 %v1414, %v1415
        %v1418 = vperm.slane %v254, 1
        %v1419 = vadd.f32 %v1416, %v1418
        %v1420 = vadd.f32 %v1417, %v1418
        %v1421 = vperm.slane %v254, 2
        %1422 = vrot.lane.b32.xlu0 %v1336, 64
        %v1423 = vpop.permute.xlu0 %1422
        %1424 = vrot.lane.b32.xlu0 %v1337, 64
        %v1425 = vpop.permute.xlu0 %1424
        %v1426 = vsel %vm302, %v1423, 0
        %v1428 = vsel %vm302, %v1425, 0
        %1430 = vmatpush.msra.mxu0 0.0
        %1431 = vmatpush.msra.mxu0 0.0
        %1432 = vmatpush.msra.mxu0 0.0
        %1433 = vmatpush.msra.mxu0 0.0
        %1434 = vmatpush.msra.mxu0 0.0
        %1435 = vmatpush.msra.mxu0 0.0
        %1436 = vmatpush.msra.mxu0 0.0
        %1437 = vmatpush.msra.mxu0 0.0
        %1438 = vmatpush.msra.mxu0 0.0
        %1439 = vmatpush.msra.mxu0 0.0
        %1440 = vmatpush.msra.mxu0 0.0
        %1441 = vmatpush.msra.mxu0 0.0
        %1442 = vmatpush.msra.mxu0 0.0
        %1443 = vmatpush.msra.mxu0 0.0
        %1444 = vmatpush.msra.mxu0 0.0
        %1445 = vmatpush.msra.mxu0 %v252
        %1446 = vmatmul.f32.gmra.mxu0 %v1426
        %v1447 = vpop.f32.mrf.mxu0
        %v1448 = vadd.f32 %v1421, %v1447
        %1449 = vmatmul.f32.gmra.mxu0 %v1428
        %v1450 = vpop.f32.mrf.mxu0
        %v1451 = vadd.f32 %v1421, %v1450
        %1452 = vdwg.mxu0
        %v1453 = vmul.f32 %v1448, 0.5
        %v1454 = vmul.f32 %v1451, 0.5
        %v1455 = vadd.f32 %v1419, %v1453
        %v1456 = vadd.f32 %v1420, %v1454
        %1457 = vst.msk [vmem:[#allocation2] sm:$0xff] %vm256, %v1455
        %1458 = vst.msk [vmem:[#allocation2 + $0x8] sm:$0xff] %vm256, %v1456
        %p1459 = scmp.eq.s32.totalorder %s16, 1
        // Predicated region
        $region41: #{tpu_custom_call.1} parent=35 // pred_check
          %p1460 = pneg %p1459
        $region42: #{tpu_custom_call.1} parent=35 // pred_check_branch
          %1462 = sbr.rel (%p1460) target = $region44
        $region43: #{tpu_custom_call.1} parent=35 // pred_region
          %1463 = vst.msk [vmem:[#allocation3] sm:$0xff] %vm256, %v1455
          %1464 = vst.msk [vmem:[#allocation3 + $0x8] sm:$0xff] %vm256, %v1456
        $region44: #{tpu_custom_call.1} parent=35 // pred_fallthru
          _
        // Predicated region
        $region45: #{tpu_custom_call.1} parent=35 // pred_check
          %p1465 = pneg %p128
        $region46: #{tpu_custom_call.1} parent=35 // pred_check_branch
          %1467 = sbr.rel (%p1465) target = $region48
        $region47: #{tpu_custom_call.1} parent=35 // pred_region
          %1469 = vsyncadd [#allocation4], 0
          %s1470 = sshll.u32 [#allocation3], 4
          %s1471 = int_to_ptr.vmem [resolvable:$true] %s1470
          %s1472 = sshll.u32 %s4, 4
          %s1473 = int_to_ptr.hbm [resolvable:$true] %s1472
          %1478 = dma.vmem_to_hbm [thread:$0]  %s1471, 256, %s1473, [#allocation4], 128, 128, 8
        $region48: #{tpu_custom_call.1} parent=35 // pred_fallthru
          _
        // Predicated region
        $region49: #{tpu_custom_call.1} parent=35 // pred_check
          %p1479 = pneg %p128
        $region50: #{tpu_custom_call.1} parent=35 // pred_check_branch
          %1481 = sbr.rel (%p1479) target = $region52
        $region51: #{tpu_custom_call.1} parent=35 // pred_region
          %1483 = dma.done [#allocation4], 256
        $region52: #{tpu_custom_call.1} parent=35 // pred_fallthru
          _
      $region36: #{tpu_custom_call.1} parent=5 // pred_fallthru
        _
      %p1484 = scmp.le.s32.totalorder 2, %s11
      // Predicated region
      $region53: #{tpu_custom_call.1} parent=5 // pred_check
        %p1485 = pneg %p1484
      $region54: #{tpu_custom_call.1} parent=5 // pred_check_branch
        %1487 = sbr.rel (%p1485) target = $region56
      $region55: #{tpu_custom_call.1} parent=5 // pred_region
        %s1488 = ssub.s32 %s11, 2
      $region56: #{tpu_custom_call.1} parent=5 // pred_fallthru
        _
    $region6: #{tpu_custom_call.1} parent=1 // loop_footer
      %s15 = sadd.s32 1, %s11
    $region7: #{tpu_custom_call.1} parent=1 // loop_footer_branch
      %10 = sbr.rel target = $region3
    $region8: #{tpu_custom_call.1} parent=1 // loop_exit
      _
    %1489 = vsyncpa [#allocation4], 1
    %s1490 = scalar_lea.sflag [#allocation4], 1
    %1491 = vsyncpa %s1490, 1

</llo_original>
